<compile_context>
chip_gen: v6e
topology: v6e:2x2x1
jax: 0.10.0
libtpu: 0.0.40
codegen_flags: <defaults>
</compile_context>

<pallas_src>
import functools

import jax
import jax.numpy as jnp
from jax import lax
from jax.experimental import pallas as pl
from jax.experimental.pallas import tpu as pltpu


def _atb_kernel(x_ref, w1_ref, b1_ref, w2_ref, b2_ref, o_ref, pad_ref,
                *, H, W, PAD):
    """One (branch, batch) element of ATB.

    x_ref  : (1, 1, C, H*W)   input half, spatial flattened on the lane axis
    w*_ref : (1, 9, C, C)     conv weights, tap-major (t = ky*3 + kx)
    b*_ref : (1, C, 1)        conv biases
    o_ref  : (1, 1, C, H*W)   output
    pad_ref: (C, H*W + 2*PAD) VMEM staging buffer for shifted-tap reads
    """
    C = x_ref.shape[2]
    HW = H * W

    # Row / column index of every output position (lane).  W is a power of two
    # at the test sizes, so this lowers to shift/and (no vector integer div).
    lane = lax.broadcasted_iota(jnp.int32, (1, HW), 1)
    if W & (W - 1) == 0:
        yy = lane >> (W.bit_length() - 1)
        xx = lane & (W - 1)
    else:
        yy = lane // W
        xx = lane % W

    # Validity mask per tap (zero-padding semantics of Conv2d(pad=1)).
    masks = []
    for ky in range(3):
        for kx in range(3):
            sy = yy + (ky - 1)
            sx = xx + (kx - 1)
            masks.append((sy >= 0) & (sy < H) & (sx >= 0) & (sx < W))

    def conv3x3(inp, w_ref, b_ref):
        # Stage the (C, HW) input once; every shifted tap is then a static
        # lane-slice load.  Masked-out positions read only the (never-written)
        # pad lanes and are zeroed by the validity mask -> no memset needed.
        pad_ref[:, PAD:PAD + HW] = inp
        acc = jnp.zeros((C, HW), jnp.float32)
        for ky in range(3):
            for kx in range(3):
                off = (ky - 1) * W + (kx - 1)
                tap = pad_ref[:, PAD + off:PAD + off + HW]          # (C, HW)
                tap = jnp.where(masks[ky * 3 + kx], tap, 0.0)
                acc = acc + jnp.dot(w_ref[0, ky * 3 + kx], tap,
                                    preferred_element_type=jnp.float32)
        return acc + b_ref[0]                                        # (C, HW)

    x = x_ref[0, 0].astype(jnp.float32)                              # (C, HW)

    h = conv3x3(x, w1_ref, b1_ref)
    h = jnp.where(h > 0.0, h, 0.1 * h)            # LeakyReLU(0.1)
    g = conv3x3(h, w2_ref, b2_ref)
    gate = 1.0 / (1.0 + jnp.exp(-g))              # sigmoid (exp on EUP)

    o_ref[0, 0] = (x * gate).astype(o_ref.dtype)


def _pack_conv_weight(w_oihw):
    """PyTorch (C_out, C_in, 3, 3) -> (9, C_out, C_in), tap-major (ky*3+kx)."""
    co, ci = w_oihw.shape[0], w_oihw.shape[1]
    return jnp.transpose(w_oihw, (2, 3, 0, 1)).reshape(9, co, ci)


def atb_forward(feat_nchw, params):
    """ATB forward. feat_nchw: (N, 2*channel, H, W) — matches PyTorch module."""
    N, C2, H, W = feat_nchw.shape
    C = params["channel"]
    assert C2 == 2 * C
    HW = H * W
    PAD = 128  # lane-aligned staging pad (>= W+1)

    # Free reshape: NCHW is contiguous, so (N, 2C, H, W) -> (N, 2, C, H*W).
    x = feat_nchw.reshape(N, 2, C, HW)

    # Branch 0 (up):   conv1 = ATB_11, conv2 = ATB_12
    # Branch 1 (down): conv1 = ATB_22, conv2 = ATB_21
    w1 = jnp.stack([_pack_conv_weight(params["w11"]),
                    _pack_conv_weight(params["w22"])])               # (2,9,C,C)
    b1 = jnp.stack([params["b11"], params["b22"]]).reshape(2, C, 1)
    w2 = jnp.stack([_pack_conv_weight(params["w12"]),
                    _pack_conv_weight(params["w21"])])               # (2,9,C,C)
    b2 = jnp.stack([params["b12"], params["b21"]]).reshape(2, C, 1)

    out = pl.pallas_call(
        functools.partial(_atb_kernel, H=H, W=W, PAD=PAD),
        out_shape=jax.ShapeDtypeStruct((N, 2, C, HW), feat_nchw.dtype),
        grid=(2, N),
        in_specs=[
            pl.BlockSpec((1, 1, C, HW), lambda br, n: (n, br, 0, 0)),
            pl.BlockSpec((1, 9, C, C), lambda br, n: (br, 0, 0, 0)),
            pl.BlockSpec((1, C, 1), lambda br, n: (br, 0, 0)),
            pl.BlockSpec((1, 9, C, C), lambda br, n: (br, 0, 0, 0)),
            pl.BlockSpec((1, C, 1), lambda br, n: (br, 0, 0)),
        ],
        out_specs=pl.BlockSpec((1, 1, C, HW), lambda br, n: (n, br, 0, 0)),
        scratch_shapes=[pltpu.VMEM((C, HW + 2 * PAD), jnp.float32)],
        compiler_params=pltpu.CompilerParams(
            dimension_semantics=("parallel", "parallel"),
            vmem_limit_bytes=32 * 1024 * 1024),
    )(x, w1, b1, w2, b2)

    return out.reshape(N, 2 * C, H, W)


# ----------------------------- pure-JAX reference -----------------------------
def _ref_conv(x, w, b):
    y = lax.conv_general_dilated(x, w, (1, 1), "SAME",
                                 dimension_numbers=("NCHW", "OIHW", "NCHW"))
    return y + b[None, :, None, None]


def atb_reference(feat, p):
    c = p["channel"]
    s0, s1 = feat[:, :c], feat[:, c:]
    lrelu = lambda t: jnp.where(t > 0, t, 0.1 * t)
    sig = jax.nn.sigmoid
    up = s0 * sig(_ref_conv(lrelu(_ref_conv(s0, p["w11"], p["b11"])),
                            p["w12"], p["b12"]))
    down = s1 * sig(_ref_conv(lrelu(_ref_conv(s1, p["w22"], p["b22"])),
                              p["w21"], p["b21"]))
    return jnp.concatenate([up, down], axis=1)


def init_params(key, channel):
    keys = jax.random.split(key, 8)
    def conv_w(k):
        return 0.1 * jax.random.normal(k, (channel, channel, 3, 3), jnp.float32)
    def conv_b(k):
        return 0.05 * jax.random.normal(k, (channel,), jnp.float32)
    return {
        "channel": channel,
        "w11": conv_w(keys[0]), "b11": conv_b(keys[1]),
        "w12": conv_w(keys[2]), "b12": conv_b(keys[3]),
        "w21": conv_w(keys[4]), "b21": conv_b(keys[5]),
        "w22": conv_w(keys[6]), "b22": conv_b(keys[7]),
    }


if __name__ == "__main__":
    key = jax.random.PRNGKey(0)
    k_param, k_x = jax.random.split(key)

    channel = 4          # ATB(channel=4): input must have 2*channel channels
    N, H, W = 2, 16, 16
    params = init_params(k_param, channel)
    feat = jax.random.normal(k_x, (N, 2 * channel, H, W), jnp.float32)

    out = jax.block_until_ready(atb_forward(feat, params))
    ref = jax.block_until_ready(atb_reference(feat, params))

    assert out.shape == (N, 2 * channel, H, W)
    err = float(jnp.max(jnp.abs(out - ref)))
    assert err < 2e-4, f"mismatch vs JAX reference: max abs err = {err}"

    print("KERNEL_OK")
</pallas_src>

<mosaic_0001>
module attributes {stable_mosaic.version = 11 : i64} {
  func.func @_atb_kernel(%arg0: i32, %arg1: i32, %arg2: memref<1x1x4x256xf32, #tpu.memory_space<vmem>>, %arg3: memref<1x9x4x4xf32, #tpu.memory_space<vmem>>, %arg4: memref<1x4x1xf32, #tpu.memory_space<vmem>>, %arg5: memref<1x9x4x4xf32, #tpu.memory_space<vmem>>, %arg6: memref<1x4x1xf32, #tpu.memory_space<vmem>>, %arg7: memref<1x1x4x256xf32, #tpu.memory_space<vmem>>, %arg8: memref<4x512xf32, #tpu.memory_space<vmem>>) attributes {dimension_semantics = [#tpu.dimension_semantics<parallel>, #tpu.dimension_semantics<parallel>], iteration_bounds = array<i64: 2, 2>, scalar_prefetch = 0 : i64, scratch_operands = 1 : i64, tpu.core_type = #tpu.core_type<tc>, window_params = [{transform_indices = @transform_0, window_bounds = array<i64: 1, 1, 4, 256>}, {transform_indices = @transform_1, window_bounds = array<i64: 1, 9, 4, 4>}, {transform_indices = @transform_2, window_bounds = array<i64: 1, 4, 1>}, {transform_indices = @transform_3, window_bounds = array<i64: 1, 9, 4, 4>}, {transform_indices = @transform_4, window_bounds = array<i64: 1, 4, 1>}, {transform_indices = @transform_5, window_bounds = array<i64: 1, 1, 4, 256>}]} {
    %0 = tpu.iota {dimensions = array<i32: 1>} : vector<1x256xi32>
    %c4_i32 = arith.constant 4 : i32
    %1 = vector.broadcast %c4_i32 : i32 to vector<1x256xi32>
    %2 = arith.shrsi %0, %1 : vector<1x256xi32>
    %c15_i32 = arith.constant 15 : i32
    %3 = vector.broadcast %c15_i32 : i32 to vector<1x256xi32>
    %4 = arith.andi %0, %3 : vector<1x256xi32>
    %c-1_i32 = arith.constant -1 : i32
    %5 = vector.broadcast %c-1_i32 : i32 to vector<1x256xi32>
    %6 = arith.addi %2, %5 : vector<1x256xi32>
    %c-1_i32_0 = arith.constant -1 : i32
    %7 = vector.broadcast %c-1_i32_0 : i32 to vector<1x256xi32>
    %8 = arith.addi %4, %7 : vector<1x256xi32>
    %c0_i32 = arith.constant 0 : i32
    %9 = vector.broadcast %c0_i32 : i32 to vector<1x256xi32>
    %10 = arith.cmpi sge, %6, %9 : vector<1x256xi32>
    %c16_i32 = arith.constant 16 : i32
    %11 = vector.broadcast %c16_i32 : i32 to vector<1x256xi32>
    %12 = arith.cmpi slt, %6, %11 : vector<1x256xi32>
    %13 = arith.andi %10, %12 : vector<1x256xi1>
    %c0_i32_1 = arith.constant 0 : i32
    %14 = vector.broadcast %c0_i32_1 : i32 to vector<1x256xi32>
    %15 = arith.cmpi sge, %8, %14 : vector<1x256xi32>
    %16 = arith.andi %13, %15 : vector<1x256xi1>
    %c16_i32_2 = arith.constant 16 : i32
    %17 = vector.broadcast %c16_i32_2 : i32 to vector<1x256xi32>
    %18 = arith.cmpi slt, %8, %17 : vector<1x256xi32>
    %19 = arith.andi %16, %18 : vector<1x256xi1>
    %c-1_i32_3 = arith.constant -1 : i32
    %20 = vector.broadcast %c-1_i32_3 : i32 to vector<1x256xi32>
    %21 = arith.addi %2, %20 : vector<1x256xi32>
    %c0_i32_4 = arith.constant 0 : i32
    %22 = vector.broadcast %c0_i32_4 : i32 to vector<1x256xi32>
    %23 = arith.addi %4, %22 : vector<1x256xi32>
    %c0_i32_5 = arith.constant 0 : i32
    %24 = vector.broadcast %c0_i32_5 : i32 to vector<1x256xi32>
    %25 = arith.cmpi sge, %21, %24 : vector<1x256xi32>
    %c16_i32_6 = arith.constant 16 : i32
    %26 = vector.broadcast %c16_i32_6 : i32 to vector<1x256xi32>
    %27 = arith.cmpi slt, %21, %26 : vector<1x256xi32>
    %28 = arith.andi %25, %27 : vector<1x256xi1>
    %c0_i32_7 = arith.constant 0 : i32
    %29 = vector.broadcast %c0_i32_7 : i32 to vector<1x256xi32>
    %30 = arith.cmpi sge, %23, %29 : vector<1x256xi32>
    %31 = arith.andi %28, %30 : vector<1x256xi1>
    %c16_i32_8 = arith.constant 16 : i32
    %32 = vector.broadcast %c16_i32_8 : i32 to vector<1x256xi32>
    %33 = arith.cmpi slt, %23, %32 : vector<1x256xi32>
    %34 = arith.andi %31, %33 : vector<1x256xi1>
    %c-1_i32_9 = arith.constant -1 : i32
    %35 = vector.broadcast %c-1_i32_9 : i32 to vector<1x256xi32>
    %36 = arith.addi %2, %35 : vector<1x256xi32>
    %c1_i32 = arith.constant 1 : i32
    %37 = vector.broadcast %c1_i32 : i32 to vector<1x256xi32>
    %38 = arith.addi %4, %37 : vector<1x256xi32>
    %c0_i32_10 = arith.constant 0 : i32
    %39 = vector.broadcast %c0_i32_10 : i32 to vector<1x256xi32>
    %40 = arith.cmpi sge, %36, %39 : vector<1x256xi32>
    %c16_i32_11 = arith.constant 16 : i32
    %41 = vector.broadcast %c16_i32_11 : i32 to vector<1x256xi32>
    %42 = arith.cmpi slt, %36, %41 : vector<1x256xi32>
    %43 = arith.andi %40, %42 : vector<1x256xi1>
    %c0_i32_12 = arith.constant 0 : i32
    %44 = vector.broadcast %c0_i32_12 : i32 to vector<1x256xi32>
    %45 = arith.cmpi sge, %38, %44 : vector<1x256xi32>
    %46 = arith.andi %43, %45 : vector<1x256xi1>
    %c16_i32_13 = arith.constant 16 : i32
    %47 = vector.broadcast %c16_i32_13 : i32 to vector<1x256xi32>
    %48 = arith.cmpi slt, %38, %47 : vector<1x256xi32>
    %49 = arith.andi %46, %48 : vector<1x256xi1>
    %c0_i32_14 = arith.constant 0 : i32
    %50 = vector.broadcast %c0_i32_14 : i32 to vector<1x256xi32>
    %51 = arith.addi %2, %50 : vector<1x256xi32>
    %c-1_i32_15 = arith.constant -1 : i32
    %52 = vector.broadcast %c-1_i32_15 : i32 to vector<1x256xi32>
    %53 = arith.addi %4, %52 : vector<1x256xi32>
    %c0_i32_16 = arith.constant 0 : i32
    %54 = vector.broadcast %c0_i32_16 : i32 to vector<1x256xi32>
    %55 = arith.cmpi sge, %51, %54 : vector<1x256xi32>
    %c16_i32_17 = arith.constant 16 : i32
    %56 = vector.broadcast %c16_i32_17 : i32 to vector<1x256xi32>
    %57 = arith.cmpi slt, %51, %56 : vector<1x256xi32>
    %58 = arith.andi %55, %57 : vector<1x256xi1>
    %c0_i32_18 = arith.constant 0 : i32
    %59 = vector.broadcast %c0_i32_18 : i32 to vector<1x256xi32>
    %60 = arith.cmpi sge, %53, %59 : vector<1x256xi32>
    %61 = arith.andi %58, %60 : vector<1x256xi1>
    %c16_i32_19 = arith.constant 16 : i32
    %62 = vector.broadcast %c16_i32_19 : i32 to vector<1x256xi32>
    %63 = arith.cmpi slt, %53, %62 : vector<1x256xi32>
    %64 = arith.andi %61, %63 : vector<1x256xi1>
    %c0_i32_20 = arith.constant 0 : i32
    %65 = vector.broadcast %c0_i32_20 : i32 to vector<1x256xi32>
    %66 = arith.addi %2, %65 : vector<1x256xi32>
    %c0_i32_21 = arith.constant 0 : i32
    %67 = vector.broadcast %c0_i32_21 : i32 to vector<1x256xi32>
    %68 = arith.addi %4, %67 : vector<1x256xi32>
    %c0_i32_22 = arith.constant 0 : i32
    %69 = vector.broadcast %c0_i32_22 : i32 to vector<1x256xi32>
    %70 = arith.cmpi sge, %66, %69 : vector<1x256xi32>
    %c16_i32_23 = arith.constant 16 : i32
    %71 = vector.broadcast %c16_i32_23 : i32 to vector<1x256xi32>
    %72 = arith.cmpi slt, %66, %71 : vector<1x256xi32>
    %73 = arith.andi %70, %72 : vector<1x256xi1>
    %c0_i32_24 = arith.constant 0 : i32
    %74 = vector.broadcast %c0_i32_24 : i32 to vector<1x256xi32>
    %75 = arith.cmpi sge, %68, %74 : vector<1x256xi32>
    %76 = arith.andi %73, %75 : vector<1x256xi1>
    %c16_i32_25 = arith.constant 16 : i32
    %77 = vector.broadcast %c16_i32_25 : i32 to vector<1x256xi32>
    %78 = arith.cmpi slt, %68, %77 : vector<1x256xi32>
    %79 = arith.andi %76, %78 : vector<1x256xi1>
    %c0_i32_26 = arith.constant 0 : i32
    %80 = vector.broadcast %c0_i32_26 : i32 to vector<1x256xi32>
    %81 = arith.addi %2, %80 : vector<1x256xi32>
    %c1_i32_27 = arith.constant 1 : i32
    %82 = vector.broadcast %c1_i32_27 : i32 to vector<1x256xi32>
    %83 = arith.addi %4, %82 : vector<1x256xi32>
    %c0_i32_28 = arith.constant 0 : i32
    %84 = vector.broadcast %c0_i32_28 : i32 to vector<1x256xi32>
    %85 = arith.cmpi sge, %81, %84 : vector<1x256xi32>
    %c16_i32_29 = arith.constant 16 : i32
    %86 = vector.broadcast %c16_i32_29 : i32 to vector<1x256xi32>
    %87 = arith.cmpi slt, %81, %86 : vector<1x256xi32>
    %88 = arith.andi %85, %87 : vector<1x256xi1>
    %c0_i32_30 = arith.constant 0 : i32
    %89 = vector.broadcast %c0_i32_30 : i32 to vector<1x256xi32>
    %90 = arith.cmpi sge, %83, %89 : vector<1x256xi32>
    %91 = arith.andi %88, %90 : vector<1x256xi1>
    %c16_i32_31 = arith.constant 16 : i32
    %92 = vector.broadcast %c16_i32_31 : i32 to vector<1x256xi32>
    %93 = arith.cmpi slt, %83, %92 : vector<1x256xi32>
    %94 = arith.andi %91, %93 : vector<1x256xi1>
    %c1_i32_32 = arith.constant 1 : i32
    %95 = vector.broadcast %c1_i32_32 : i32 to vector<1x256xi32>
    %96 = arith.addi %2, %95 : vector<1x256xi32>
    %c-1_i32_33 = arith.constant -1 : i32
    %97 = vector.broadcast %c-1_i32_33 : i32 to vector<1x256xi32>
    %98 = arith.addi %4, %97 : vector<1x256xi32>
    %c0_i32_34 = arith.constant 0 : i32
    %99 = vector.broadcast %c0_i32_34 : i32 to vector<1x256xi32>
    %100 = arith.cmpi sge, %96, %99 : vector<1x256xi32>
    %c16_i32_35 = arith.constant 16 : i32
    %101 = vector.broadcast %c16_i32_35 : i32 to vector<1x256xi32>
    %102 = arith.cmpi slt, %96, %101 : vector<1x256xi32>
    %103 = arith.andi %100, %102 : vector<1x256xi1>
    %c0_i32_36 = arith.constant 0 : i32
    %104 = vector.broadcast %c0_i32_36 : i32 to vector<1x256xi32>
    %105 = arith.cmpi sge, %98, %104 : vector<1x256xi32>
    %106 = arith.andi %103, %105 : vector<1x256xi1>
    %c16_i32_37 = arith.constant 16 : i32
    %107 = vector.broadcast %c16_i32_37 : i32 to vector<1x256xi32>
    %108 = arith.cmpi slt, %98, %107 : vector<1x256xi32>
    %109 = arith.andi %106, %108 : vector<1x256xi1>
    %c1_i32_38 = arith.constant 1 : i32
    %110 = vector.broadcast %c1_i32_38 : i32 to vector<1x256xi32>
    %111 = arith.addi %2, %110 : vector<1x256xi32>
    %c0_i32_39 = arith.constant 0 : i32
    %112 = vector.broadcast %c0_i32_39 : i32 to vector<1x256xi32>
    %113 = arith.addi %4, %112 : vector<1x256xi32>
    %c0_i32_40 = arith.constant 0 : i32
    %114 = vector.broadcast %c0_i32_40 : i32 to vector<1x256xi32>
    %115 = arith.cmpi sge, %111, %114 : vector<1x256xi32>
    %c16_i32_41 = arith.constant 16 : i32
    %116 = vector.broadcast %c16_i32_41 : i32 to vector<1x256xi32>
    %117 = arith.cmpi slt, %111, %116 : vector<1x256xi32>
    %118 = arith.andi %115, %117 : vector<1x256xi1>
    %c0_i32_42 = arith.constant 0 : i32
    %119 = vector.broadcast %c0_i32_42 : i32 to vector<1x256xi32>
    %120 = arith.cmpi sge, %113, %119 : vector<1x256xi32>
    %121 = arith.andi %118, %120 : vector<1x256xi1>
    %c16_i32_43 = arith.constant 16 : i32
    %122 = vector.broadcast %c16_i32_43 : i32 to vector<1x256xi32>
    %123 = arith.cmpi slt, %113, %122 : vector<1x256xi32>
    %124 = arith.andi %121, %123 : vector<1x256xi1>
    %c1_i32_44 = arith.constant 1 : i32
    %125 = vector.broadcast %c1_i32_44 : i32 to vector<1x256xi32>
    %126 = arith.addi %2, %125 : vector<1x256xi32>
    %c1_i32_45 = arith.constant 1 : i32
    %127 = vector.broadcast %c1_i32_45 : i32 to vector<1x256xi32>
    %128 = arith.addi %4, %127 : vector<1x256xi32>
    %c0_i32_46 = arith.constant 0 : i32
    %129 = vector.broadcast %c0_i32_46 : i32 to vector<1x256xi32>
    %130 = arith.cmpi sge, %126, %129 : vector<1x256xi32>
    %c16_i32_47 = arith.constant 16 : i32
    %131 = vector.broadcast %c16_i32_47 : i32 to vector<1x256xi32>
    %132 = arith.cmpi slt, %126, %131 : vector<1x256xi32>
    %133 = arith.andi %130, %132 : vector<1x256xi1>
    %c0_i32_48 = arith.constant 0 : i32
    %134 = vector.broadcast %c0_i32_48 : i32 to vector<1x256xi32>
    %135 = arith.cmpi sge, %128, %134 : vector<1x256xi32>
    %136 = arith.andi %133, %135 : vector<1x256xi1>
    %c16_i32_49 = arith.constant 16 : i32
    %137 = vector.broadcast %c16_i32_49 : i32 to vector<1x256xi32>
    %138 = arith.cmpi slt, %128, %137 : vector<1x256xi32>
    %139 = arith.andi %136, %138 : vector<1x256xi1>
    %c0 = arith.constant 0 : index
    %c0_50 = arith.constant 0 : index
    %c0_51 = arith.constant 0 : index
    %c0_52 = arith.constant 0 : index
    %140 = vector.load %arg2[%c0, %c0_50, %c0_51, %c0_52] : memref<1x1x4x256xf32, #tpu.memory_space<vmem>>, vector<1x1x4x256xf32>
    %141 = vector.shape_cast %140 : vector<1x1x4x256xf32> to vector<4x256xf32>
    %c0_53 = arith.constant 0 : index
    %c128 = arith.constant 128 : index
    %142 = vector.load %arg8[%c0_53, %c128] : memref<4x512xf32, #tpu.memory_space<vmem>>, vector<4x256xf32>
    tpu.vector_store %arg8[%c0_53, %c128], %141 {strides = array<i32>} : memref<4x512xf32, #tpu.memory_space<vmem>>, vector<4x256xf32>,
    %cst = arith.constant 0.000000e+00 : f32
    %143 = vector.broadcast %cst : f32 to vector<4x256xf32>
    %c0_54 = arith.constant 0 : index
    %c111 = arith.constant 111 : index
    %144 = vector.load %arg8[%c0_54, %c111] : memref<4x512xf32, #tpu.memory_space<vmem>>, vector<4x256xf32>
    %cst_55 = arith.constant 0.000000e+00 : f32
    %145 = vector.shape_cast %19 : vector<1x256xi1> to vector<1x256xi1>
    %146 = vector.broadcast %145 : vector<1x256xi1> to vector<4x256xi1>
    %147 = vector.broadcast %cst_55 : f32 to vector<4x256xf32>
    %148 = arith.select %146, %144, %147 : vector<4x256xi1>, vector<4x256xf32>
    %c0_56 = arith.constant 0 : index
    %c0_57 = arith.constant 0 : index
    %c0_58 = arith.constant 0 : index
    %c0_59 = arith.constant 0 : index
    %149 = vector.load %arg3[%c0_56, %c0_57, %c0_58, %c0_59] : memref<1x9x4x4xf32, #tpu.memory_space<vmem>>, vector<1x1x4x4xf32>
    %150 = vector.shape_cast %149 : vector<1x1x4x4xf32> to vector<4x4xf32>
    %cst_60 = arith.constant dense<0.000000e+00> : vector<4x256xf32>
    %151 = tpu.matmul %150, %148, %cst_60 {dimension_numbers = #tpu.dot_dimension_numbers<[1], [0], [0], [1], [0, 0, 1, 1], [], []>} : vector<4x4xf32>, vector<4x256xf32>, vector<4x256xf32> -> vector<4x256xf32>
    %152 = arith.addf %143, %151 : vector<4x256xf32>
    %c0_61 = arith.constant 0 : index
    %c112 = arith.constant 112 : index
    %153 = vector.load %arg8[%c0_61, %c112] : memref<4x512xf32, #tpu.memory_space<vmem>>, vector<4x256xf32>
    %cst_62 = arith.constant 0.000000e+00 : f32
    %154 = vector.shape_cast %34 : vector<1x256xi1> to vector<1x256xi1>
    %155 = vector.broadcast %154 : vector<1x256xi1> to vector<4x256xi1>
    %156 = vector.broadcast %cst_62 : f32 to vector<4x256xf32>
    %157 = arith.select %155, %153, %156 : vector<4x256xi1>, vector<4x256xf32>
    %c0_63 = arith.constant 0 : index
    %c1 = arith.constant 1 : index
    %c0_64 = arith.constant 0 : index
    %c0_65 = arith.constant 0 : index
    %158 = vector.load %arg3[%c0_63, %c1, %c0_64, %c0_65] : memref<1x9x4x4xf32, #tpu.memory_space<vmem>>, vector<1x1x4x4xf32>
    %159 = vector.shape_cast %158 : vector<1x1x4x4xf32> to vector<4x4xf32>
    %cst_66 = arith.constant dense<0.000000e+00> : vector<4x256xf32>
    %160 = tpu.matmul %159, %157, %cst_66 {dimension_numbers = #tpu.dot_dimension_numbers<[1], [0], [0], [1], [0, 0, 1, 1], [], []>} : vector<4x4xf32>, vector<4x256xf32>, vector<4x256xf32> -> vector<4x256xf32>
    %161 = arith.addf %152, %160 : vector<4x256xf32>
    %c0_67 = arith.constant 0 : index
    %c113 = arith.constant 113 : index
    %162 = vector.load %arg8[%c0_67, %c113] : memref<4x512xf32, #tpu.memory_space<vmem>>, vector<4x256xf32>
    %cst_68 = arith.constant 0.000000e+00 : f32
    %163 = vector.shape_cast %49 : vector<1x256xi1> to vector<1x256xi1>
    %164 = vector.broadcast %163 : vector<1x256xi1> to vector<4x256xi1>
    %165 = vector.broadcast %cst_68 : f32 to vector<4x256xf32>
    %166 = arith.select %164, %162, %165 : vector<4x256xi1>, vector<4x256xf32>
    %c0_69 = arith.constant 0 : index
    %c2 = arith.constant 2 : index
    %c0_70 = arith.constant 0 : index
    %c0_71 = arith.constant 0 : index
    %167 = vector.load %arg3[%c0_69, %c2, %c0_70, %c0_71] : memref<1x9x4x4xf32, #tpu.memory_space<vmem>>, vector<1x1x4x4xf32>
    %168 = vector.shape_cast %167 : vector<1x1x4x4xf32> to vector<4x4xf32>
    %cst_72 = arith.constant dense<0.000000e+00> : vector<4x256xf32>
    %169 = tpu.matmul %168, %166, %cst_72 {dimension_numbers = #tpu.dot_dimension_numbers<[1], [0], [0], [1], [0, 0, 1, 1], [], []>} : vector<4x4xf32>, vector<4x256xf32>, vector<4x256xf32> -> vector<4x256xf32>
    %170 = arith.addf %161, %169 : vector<4x256xf32>
    %c0_73 = arith.constant 0 : index
    %c127 = arith.constant 127 : index
    %171 = vector.load %arg8[%c0_73, %c127] : memref<4x512xf32, #tpu.memory_space<vmem>>, vector<4x256xf32>
    %cst_74 = arith.constant 0.000000e+00 : f32
    %172 = vector.shape_cast %64 : vector<1x256xi1> to vector<1x256xi1>
    %173 = vector.broadcast %172 : vector<1x256xi1> to vector<4x256xi1>
    %174 = vector.broadcast %cst_74 : f32 to vector<4x256xf32>
    %175 = arith.select %173, %171, %174 : vector<4x256xi1>, vector<4x256xf32>
    %c0_75 = arith.constant 0 : index
    %c3 = arith.constant 3 : index
    %c0_76 = arith.constant 0 : index
    %c0_77 = arith.constant 0 : index
    %176 = vector.load %arg3[%c0_75, %c3, %c0_76, %c0_77] : memref<1x9x4x4xf32, #tpu.memory_space<vmem>>, vector<1x1x4x4xf32>
    %177 = vector.shape_cast %176 : vector<1x1x4x4xf32> to vector<4x4xf32>
    %cst_78 = arith.constant dense<0.000000e+00> : vector<4x256xf32>
    %178 = tpu.matmul %177, %175, %cst_78 {dimension_numbers = #tpu.dot_dimension_numbers<[1], [0], [0], [1], [0, 0, 1, 1], [], []>} : vector<4x4xf32>, vector<4x256xf32>, vector<4x256xf32> -> vector<4x256xf32>
    %179 = arith.addf %170, %178 : vector<4x256xf32>
    %c0_79 = arith.constant 0 : index
    %c128_80 = arith.constant 128 : index
    %180 = vector.load %arg8[%c0_79, %c128_80] : memref<4x512xf32, #tpu.memory_space<vmem>>, vector<4x256xf32>
    %cst_81 = arith.constant 0.000000e+00 : f32
    %181 = vector.shape_cast %79 : vector<1x256xi1> to vector<1x256xi1>
    %182 = vector.broadcast %181 : vector<1x256xi1> to vector<4x256xi1>
    %183 = vector.broadcast %cst_81 : f32 to vector<4x256xf32>
    %184 = arith.select %182, %180, %183 : vector<4x256xi1>, vector<4x256xf32>
    %c0_82 = arith.constant 0 : index
    %c4 = arith.constant 4 : index
    %c0_83 = arith.constant 0 : index
    %c0_84 = arith.constant 0 : index
    %185 = vector.load %arg3[%c0_82, %c4, %c0_83, %c0_84] : memref<1x9x4x4xf32, #tpu.memory_space<vmem>>, vector<1x1x4x4xf32>
    %186 = vector.shape_cast %185 : vector<1x1x4x4xf32> to vector<4x4xf32>
    %cst_85 = arith.constant dense<0.000000e+00> : vector<4x256xf32>
    %187 = tpu.matmul %186, %184, %cst_85 {dimension_numbers = #tpu.dot_dimension_numbers<[1], [0], [0], [1], [0, 0, 1, 1], [], []>} : vector<4x4xf32>, vector<4x256xf32>, vector<4x256xf32> -> vector<4x256xf32>
    %188 = arith.addf %179, %187 : vector<4x256xf32>
    %c0_86 = arith.constant 0 : index
    %c129 = arith.constant 129 : index
    %189 = vector.load %arg8[%c0_86, %c129] : memref<4x512xf32, #tpu.memory_space<vmem>>, vector<4x256xf32>
    %cst_87 = arith.constant 0.000000e+00 : f32
    %190 = vector.shape_cast %94 : vector<1x256xi1> to vector<1x256xi1>
    %191 = vector.broadcast %190 : vector<1x256xi1> to vector<4x256xi1>
    %192 = vector.broadcast %cst_87 : f32 to vector<4x256xf32>
    %193 = arith.select %191, %189, %192 : vector<4x256xi1>, vector<4x256xf32>
    %c0_88 = arith.constant 0 : index
    %c5 = arith.constant 5 : index
    %c0_89 = arith.constant 0 : index
    %c0_90 = arith.constant 0 : index
    %194 = vector.load %arg3[%c0_88, %c5, %c0_89, %c0_90] : memref<1x9x4x4xf32, #tpu.memory_space<vmem>>, vector<1x1x4x4xf32>
    %195 = vector.shape_cast %194 : vector<1x1x4x4xf32> to vector<4x4xf32>
    %cst_91 = arith.constant dense<0.000000e+00> : vector<4x256xf32>
    %196 = tpu.matmul %195, %193, %cst_91 {dimension_numbers = #tpu.dot_dimension_numbers<[1], [0], [0], [1], [0, 0, 1, 1], [], []>} : vector<4x4xf32>, vector<4x256xf32>, vector<4x256xf32> -> vector<4x256xf32>
    %197 = arith.addf %188, %196 : vector<4x256xf32>
    %c0_92 = arith.constant 0 : index
    %c143 = arith.constant 143 : index
    %198 = vector.load %arg8[%c0_92, %c143] : memref<4x512xf32, #tpu.memory_space<vmem>>, vector<4x256xf32>
    %cst_93 = arith.constant 0.000000e+00 : f32
    %199 = vector.shape_cast %109 : vector<1x256xi1> to vector<1x256xi1>
    %200 = vector.broadcast %199 : vector<1x256xi1> to vector<4x256xi1>
    %201 = vector.broadcast %cst_93 : f32 to vector<4x256xf32>
    %202 = arith.select %200, %198, %201 : vector<4x256xi1>, vector<4x256xf32>
    %c0_94 = arith.constant 0 : index
    %c6 = arith.constant 6 : index
    %c0_95 = arith.constant 0 : index
    %c0_96 = arith.constant 0 : index
    %203 = vector.load %arg3[%c0_94, %c6, %c0_95, %c0_96] : memref<1x9x4x4xf32, #tpu.memory_space<vmem>>, vector<1x1x4x4xf32>
    %204 = vector.shape_cast %203 : vector<1x1x4x4xf32> to vector<4x4xf32>
    %cst_97 = arith.constant dense<0.000000e+00> : vector<4x256xf32>
    %205 = tpu.matmul %204, %202, %cst_97 {dimension_numbers = #tpu.dot_dimension_numbers<[1], [0], [0], [1], [0, 0, 1, 1], [], []>} : vector<4x4xf32>, vector<4x256xf32>, vector<4x256xf32> -> vector<4x256xf32>
    %206 = arith.addf %197, %205 : vector<4x256xf32>
    %c0_98 = arith.constant 0 : index
    %c144 = arith.constant 144 : index
    %207 = vector.load %arg8[%c0_98, %c144] : memref<4x512xf32, #tpu.memory_space<vmem>>, vector<4x256xf32>
    %cst_99 = arith.constant 0.000000e+00 : f32
    %208 = vector.shape_cast %124 : vector<1x256xi1> to vector<1x256xi1>
    %209 = vector.broadcast %208 : vector<1x256xi1> to vector<4x256xi1>
    %210 = vector.broadcast %cst_99 : f32 to vector<4x256xf32>
    %211 = arith.select %209, %207, %210 : vector<4x256xi1>, vector<4x256xf32>
    %c0_100 = arith.constant 0 : index
    %c7 = arith.constant 7 : index
    %c0_101 = arith.constant 0 : index
    %c0_102 = arith.constant 0 : index
    %212 = vector.load %arg3[%c0_100, %c7, %c0_101, %c0_102] : memref<1x9x4x4xf32, #tpu.memory_space<vmem>>, vector<1x1x4x4xf32>
    %213 = vector.shape_cast %212 : vector<1x1x4x4xf32> to vector<4x4xf32>
    %cst_103 = arith.constant dense<0.000000e+00> : vector<4x256xf32>
    %214 = tpu.matmul %213, %211, %cst_103 {dimension_numbers = #tpu.dot_dimension_numbers<[1], [0], [0], [1], [0, 0, 1, 1], [], []>} : vector<4x4xf32>, vector<4x256xf32>, vector<4x256xf32> -> vector<4x256xf32>
    %215 = arith.addf %206, %214 : vector<4x256xf32>
    %c0_104 = arith.constant 0 : index
    %c145 = arith.constant 145 : index
    %216 = vector.load %arg8[%c0_104, %c145] : memref<4x512xf32, #tpu.memory_space<vmem>>, vector<4x256xf32>
    %cst_105 = arith.constant 0.000000e+00 : f32
    %217 = vector.shape_cast %139 : vector<1x256xi1> to vector<1x256xi1>
    %218 = vector.broadcast %217 : vector<1x256xi1> to vector<4x256xi1>
    %219 = vector.broadcast %cst_105 : f32 to vector<4x256xf32>
    %220 = arith.select %218, %216, %219 : vector<4x256xi1>, vector<4x256xf32>
    %c0_106 = arith.constant 0 : index
    %c8 = arith.constant 8 : index
    %c0_107 = arith.constant 0 : index
    %c0_108 = arith.constant 0 : index
    %221 = vector.load %arg3[%c0_106, %c8, %c0_107, %c0_108] : memref<1x9x4x4xf32, #tpu.memory_space<vmem>>, vector<1x1x4x4xf32>
    %222 = vector.shape_cast %221 : vector<1x1x4x4xf32> to vector<4x4xf32>
    %cst_109 = arith.constant dense<0.000000e+00> : vector<4x256xf32>
    %223 = tpu.matmul %222, %220, %cst_109 {dimension_numbers = #tpu.dot_dimension_numbers<[1], [0], [0], [1], [0, 0, 1, 1], [], []>} : vector<4x4xf32>, vector<4x256xf32>, vector<4x256xf32> -> vector<4x256xf32>
    %224 = arith.addf %215, %223 : vector<4x256xf32>
    %c0_110 = arith.constant 0 : index
    %c0_111 = arith.constant 0 : index
    %c0_112 = arith.constant 0 : index
    %225 = vector.load %arg4[%c0_110, %c0_111, %c0_112] : memref<1x4x1xf32, #tpu.memory_space<vmem>>, vector<1x4x1xf32>
    %226 = vector.shape_cast %225 : vector<1x4x1xf32> to vector<4x1xf32>
    %227 = vector.broadcast %226 : vector<4x1xf32> to vector<4x256xf32>
    %228 = arith.addf %224, %227 : vector<4x256xf32>
    %cst_113 = arith.constant 0.000000e+00 : f32
    %229 = vector.broadcast %cst_113 : f32 to vector<4x256xf32>
    %230 = arith.cmpf ogt, %228, %229 : vector<4x256xf32>
    %cst_114 = arith.constant 1.000000e-01 : f32
    %231 = vector.broadcast %cst_114 : f32 to vector<4x256xf32>
    %232 = arith.mulf %231, %228 : vector<4x256xf32>
    %233 = arith.select %230, %228, %232 : vector<4x256xi1>, vector<4x256xf32>
    %c0_115 = arith.constant 0 : index
    %c128_116 = arith.constant 128 : index
    %234 = vector.load %arg8[%c0_115, %c128_116] : memref<4x512xf32, #tpu.memory_space<vmem>>, vector<4x256xf32>
    tpu.vector_store %arg8[%c0_115, %c128_116], %233 {strides = array<i32>} : memref<4x512xf32, #tpu.memory_space<vmem>>, vector<4x256xf32>,
    %cst_117 = arith.constant 0.000000e+00 : f32
    %235 = vector.broadcast %cst_117 : f32 to vector<4x256xf32>
    %c0_118 = arith.constant 0 : index
    %c111_119 = arith.constant 111 : index
    %236 = vector.load %arg8[%c0_118, %c111_119] : memref<4x512xf32, #tpu.memory_space<vmem>>, vector<4x256xf32>
    %cst_120 = arith.constant 0.000000e+00 : f32
    %237 = vector.shape_cast %19 : vector<1x256xi1> to vector<1x256xi1>
    %238 = vector.broadcast %237 : vector<1x256xi1> to vector<4x256xi1>
    %239 = vector.broadcast %cst_120 : f32 to vector<4x256xf32>
    %240 = arith.select %238, %236, %239 : vector<4x256xi1>, vector<4x256xf32>
    %c0_121 = arith.constant 0 : index
    %c0_122 = arith.constant 0 : index
    %c0_123 = arith.constant 0 : index
    %c0_124 = arith.constant 0 : index
    %241 = vector.load %arg5[%c0_121, %c0_122, %c0_123, %c0_124] : memref<1x9x4x4xf32, #tpu.memory_space<vmem>>, vector<1x1x4x4xf32>
    %242 = vector.shape_cast %241 : vector<1x1x4x4xf32> to vector<4x4xf32>
    %cst_125 = arith.constant dense<0.000000e+00> : vector<4x256xf32>
    %243 = tpu.matmul %242, %240, %cst_125 {dimension_numbers = #tpu.dot_dimension_numbers<[1], [0], [0], [1], [0, 0, 1, 1], [], []>} : vector<4x4xf32>, vector<4x256xf32>, vector<4x256xf32> -> vector<4x256xf32>
    %244 = arith.addf %235, %243 : vector<4x256xf32>
    %c0_126 = arith.constant 0 : index
    %c112_127 = arith.constant 112 : index
    %245 = vector.load %arg8[%c0_126, %c112_127] : memref<4x512xf32, #tpu.memory_space<vmem>>, vector<4x256xf32>
    %cst_128 = arith.constant 0.000000e+00 : f32
    %246 = vector.shape_cast %34 : vector<1x256xi1> to vector<1x256xi1>
    %247 = vector.broadcast %246 : vector<1x256xi1> to vector<4x256xi1>
    %248 = vector.broadcast %cst_128 : f32 to vector<4x256xf32>
    %249 = arith.select %247, %245, %248 : vector<4x256xi1>, vector<4x256xf32>
    %c0_129 = arith.constant 0 : index
    %c1_130 = arith.constant 1 : index
    %c0_131 = arith.constant 0 : index
    %c0_132 = arith.constant 0 : index
    %250 = vector.load %arg5[%c0_129, %c1_130, %c0_131, %c0_132] : memref<1x9x4x4xf32, #tpu.memory_space<vmem>>, vector<1x1x4x4xf32>
    %251 = vector.shape_cast %250 : vector<1x1x4x4xf32> to vector<4x4xf32>
    %cst_133 = arith.constant dense<0.000000e+00> : vector<4x256xf32>
    %252 = tpu.matmul %251, %249, %cst_133 {dimension_numbers = #tpu.dot_dimension_numbers<[1], [0], [0], [1], [0, 0, 1, 1], [], []>} : vector<4x4xf32>, vector<4x256xf32>, vector<4x256xf32> -> vector<4x256xf32>
    %253 = arith.addf %244, %252 : vector<4x256xf32>
    %c0_134 = arith.constant 0 : index
    %c113_135 = arith.constant 113 : index
    %254 = vector.load %arg8[%c0_134, %c113_135] : memref<4x512xf32, #tpu.memory_space<vmem>>, vector<4x256xf32>
    %cst_136 = arith.constant 0.000000e+00 : f32
    %255 = vector.shape_cast %49 : vector<1x256xi1> to vector<1x256xi1>
    %256 = vector.broadcast %255 : vector<1x256xi1> to vector<4x256xi1>
    %257 = vector.broadcast %cst_136 : f32 to vector<4x256xf32>
    %258 = arith.select %256, %254, %257 : vector<4x256xi1>, vector<4x256xf32>
    %c0_137 = arith.constant 0 : index
    %c2_138 = arith.constant 2 : index
    %c0_139 = arith.constant 0 : index
    %c0_140 = arith.constant 0 : index
    %259 = vector.load %arg5[%c0_137, %c2_138, %c0_139, %c0_140] : memref<1x9x4x4xf32, #tpu.memory_space<vmem>>, vector<1x1x4x4xf32>
    %260 = vector.shape_cast %259 : vector<1x1x4x4xf32> to vector<4x4xf32>
    %cst_141 = arith.constant dense<0.000000e+00> : vector<4x256xf32>
    %261 = tpu.matmul %260, %258, %cst_141 {dimension_numbers = #tpu.dot_dimension_numbers<[1], [0], [0], [1], [0, 0, 1, 1], [], []>} : vector<4x4xf32>, vector<4x256xf32>, vector<4x256xf32> -> vector<4x256xf32>
    %262 = arith.addf %253, %261 : vector<4x256xf32>
    %c0_142 = arith.constant 0 : index
    %c127_143 = arith.constant 127 : index
    %263 = vector.load %arg8[%c0_142, %c127_143] : memref<4x512xf32, #tpu.memory_space<vmem>>, vector<4x256xf32>
    %cst_144 = arith.constant 0.000000e+00 : f32
    %264 = vector.shape_cast %64 : vector<1x256xi1> to vector<1x256xi1>
    %265 = vector.broadcast %264 : vector<1x256xi1> to vector<4x256xi1>
    %266 = vector.broadcast %cst_144 : f32 to vector<4x256xf32>
    %267 = arith.select %265, %263, %266 : vector<4x256xi1>, vector<4x256xf32>
    %c0_145 = arith.constant 0 : index
    %c3_146 = arith.constant 3 : index
    %c0_147 = arith.constant 0 : index
    %c0_148 = arith.constant 0 : index
    %268 = vector.load %arg5[%c0_145, %c3_146, %c0_147, %c0_148] : memref<1x9x4x4xf32, #tpu.memory_space<vmem>>, vector<1x1x4x4xf32>
    %269 = vector.shape_cast %268 : vector<1x1x4x4xf32> to vector<4x4xf32>
    %cst_149 = arith.constant dense<0.000000e+00> : vector<4x256xf32>
    %270 = tpu.matmul %269, %267, %cst_149 {dimension_numbers = #tpu.dot_dimension_numbers<[1], [0], [0], [1], [0, 0, 1, 1], [], []>} : vector<4x4xf32>, vector<4x256xf32>, vector<4x256xf32> -> vector<4x256xf32>
    %271 = arith.addf %262, %270 : vector<4x256xf32>
    %c0_150 = arith.constant 0 : index
    %c128_151 = arith.constant 128 : index
    %272 = vector.load %arg8[%c0_150, %c128_151] : memref<4x512xf32, #tpu.memory_space<vmem>>, vector<4x256xf32>
    %cst_152 = arith.constant 0.000000e+00 : f32
    %273 = vector.shape_cast %79 : vector<1x256xi1> to vector<1x256xi1>
    %274 = vector.broadcast %273 : vector<1x256xi1> to vector<4x256xi1>
    %275 = vector.broadcast %cst_152 : f32 to vector<4x256xf32>
    %276 = arith.select %274, %272, %275 : vector<4x256xi1>, vector<4x256xf32>
    %c0_153 = arith.constant 0 : index
    %c4_154 = arith.constant 4 : index
    %c0_155 = arith.constant 0 : index
    %c0_156 = arith.constant 0 : index
    %277 = vector.load %arg5[%c0_153, %c4_154, %c0_155, %c0_156] : memref<1x9x4x4xf32, #tpu.memory_space<vmem>>, vector<1x1x4x4xf32>
    %278 = vector.shape_cast %277 : vector<1x1x4x4xf32> to vector<4x4xf32>
    %cst_157 = arith.constant dense<0.000000e+00> : vector<4x256xf32>
    %279 = tpu.matmul %278, %276, %cst_157 {dimension_numbers = #tpu.dot_dimension_numbers<[1], [0], [0], [1], [0, 0, 1, 1], [], []>} : vector<4x4xf32>, vector<4x256xf32>, vector<4x256xf32> -> vector<4x256xf32>
    %280 = arith.addf %271, %279 : vector<4x256xf32>
    %c0_158 = arith.constant 0 : index
    %c129_159 = arith.constant 129 : index
    %281 = vector.load %arg8[%c0_158, %c129_159] : memref<4x512xf32, #tpu.memory_space<vmem>>, vector<4x256xf32>
    %cst_160 = arith.constant 0.000000e+00 : f32
    %282 = vector.shape_cast %94 : vector<1x256xi1> to vector<1x256xi1>
    %283 = vector.broadcast %282 : vector<1x256xi1> to vector<4x256xi1>
    %284 = vector.broadcast %cst_160 : f32 to vector<4x256xf32>
    %285 = arith.select %283, %281, %284 : vector<4x256xi1>, vector<4x256xf32>
    %c0_161 = arith.constant 0 : index
    %c5_162 = arith.constant 5 : index
    %c0_163 = arith.constant 0 : index
    %c0_164 = arith.constant 0 : index
    %286 = vector.load %arg5[%c0_161, %c5_162, %c0_163, %c0_164] : memref<1x9x4x4xf32, #tpu.memory_space<vmem>>, vector<1x1x4x4xf32>
    %287 = vector.shape_cast %286 : vector<1x1x4x4xf32> to vector<4x4xf32>
    %cst_165 = arith.constant dense<0.000000e+00> : vector<4x256xf32>
    %288 = tpu.matmul %287, %285, %cst_165 {dimension_numbers = #tpu.dot_dimension_numbers<[1], [0], [0], [1], [0, 0, 1, 1], [], []>} : vector<4x4xf32>, vector<4x256xf32>, vector<4x256xf32> -> vector<4x256xf32>
    %289 = arith.addf %280, %288 : vector<4x256xf32>
    %c0_166 = arith.constant 0 : index
    %c143_167 = arith.constant 143 : index
    %290 = vector.load %arg8[%c0_166, %c143_167] : memref<4x512xf32, #tpu.memory_space<vmem>>, vector<4x256xf32>
    %cst_168 = arith.constant 0.000000e+00 : f32
    %291 = vector.shape_cast %109 : vector<1x256xi1> to vector<1x256xi1>
    %292 = vector.broadcast %291 : vector<1x256xi1> to vector<4x256xi1>
    %293 = vector.broadcast %cst_168 : f32 to vector<4x256xf32>
    %294 = arith.select %292, %290, %293 : vector<4x256xi1>, vector<4x256xf32>
    %c0_169 = arith.constant 0 : index
    %c6_170 = arith.constant 6 : index
    %c0_171 = arith.constant 0 : index
    %c0_172 = arith.constant 0 : index
    %295 = vector.load %arg5[%c0_169, %c6_170, %c0_171, %c0_172] : memref<1x9x4x4xf32, #tpu.memory_space<vmem>>, vector<1x1x4x4xf32>
    %296 = vector.shape_cast %295 : vector<1x1x4x4xf32> to vector<4x4xf32>
    %cst_173 = arith.constant dense<0.000000e+00> : vector<4x256xf32>
    %297 = tpu.matmul %296, %294, %cst_173 {dimension_numbers = #tpu.dot_dimension_numbers<[1], [0], [0], [1], [0, 0, 1, 1], [], []>} : vector<4x4xf32>, vector<4x256xf32>, vector<4x256xf32> -> vector<4x256xf32>
    %298 = arith.addf %289, %297 : vector<4x256xf32>
    %c0_174 = arith.constant 0 : index
    %c144_175 = arith.constant 144 : index
    %299 = vector.load %arg8[%c0_174, %c144_175] : memref<4x512xf32, #tpu.memory_space<vmem>>, vector<4x256xf32>
    %cst_176 = arith.constant 0.000000e+00 : f32
    %300 = vector.shape_cast %124 : vector<1x256xi1> to vector<1x256xi1>
    %301 = vector.broadcast %300 : vector<1x256xi1> to vector<4x256xi1>
    %302 = vector.broadcast %cst_176 : f32 to vector<4x256xf32>
    %303 = arith.select %301, %299, %302 : vector<4x256xi1>, vector<4x256xf32>
    %c0_177 = arith.constant 0 : index
    %c7_178 = arith.constant 7 : index
    %c0_179 = arith.constant 0 : index
    %c0_180 = arith.constant 0 : index
    %304 = vector.load %arg5[%c0_177, %c7_178, %c0_179, %c0_180] : memref<1x9x4x4xf32, #tpu.memory_space<vmem>>, vector<1x1x4x4xf32>
    %305 = vector.shape_cast %304 : vector<1x1x4x4xf32> to vector<4x4xf32>
    %cst_181 = arith.constant dense<0.000000e+00> : vector<4x256xf32>
    %306 = tpu.matmul %305, %303, %cst_181 {dimension_numbers = #tpu.dot_dimension_numbers<[1], [0], [0], [1], [0, 0, 1, 1], [], []>} : vector<4x4xf32>, vector<4x256xf32>, vector<4x256xf32> -> vector<4x256xf32>
    %307 = arith.addf %298, %306 : vector<4x256xf32>
    %c0_182 = arith.constant 0 : index
    %c145_183 = arith.constant 145 : index
    %308 = vector.load %arg8[%c0_182, %c145_183] : memref<4x512xf32, #tpu.memory_space<vmem>>, vector<4x256xf32>
    %cst_184 = arith.constant 0.000000e+00 : f32
    %309 = vector.shape_cast %139 : vector<1x256xi1> to vector<1x256xi1>
    %310 = vector.broadcast %309 : vector<1x256xi1> to vector<4x256xi1>
    %311 = vector.broadcast %cst_184 : f32 to vector<4x256xf32>
    %312 = arith.select %310, %308, %311 : vector<4x256xi1>, vector<4x256xf32>
    %c0_185 = arith.constant 0 : index
    %c8_186 = arith.constant 8 : index
    %c0_187 = arith.constant 0 : index
    %c0_188 = arith.constant 0 : index
    %313 = vector.load %arg5[%c0_185, %c8_186, %c0_187, %c0_188] : memref<1x9x4x4xf32, #tpu.memory_space<vmem>>, vector<1x1x4x4xf32>
    %314 = vector.shape_cast %313 : vector<1x1x4x4xf32> to vector<4x4xf32>
    %cst_189 = arith.constant dense<0.000000e+00> : vector<4x256xf32>
    %315 = tpu.matmul %314, %312, %cst_189 {dimension_numbers = #tpu.dot_dimension_numbers<[1], [0], [0], [1], [0, 0, 1, 1], [], []>} : vector<4x4xf32>, vector<4x256xf32>, vector<4x256xf32> -> vector<4x256xf32>
    %316 = arith.addf %307, %315 : vector<4x256xf32>
    %c0_190 = arith.constant 0 : index
    %c0_191 = arith.constant 0 : index
    %c0_192 = arith.constant 0 : index
    %317 = vector.load %arg6[%c0_190, %c0_191, %c0_192] : memref<1x4x1xf32, #tpu.memory_space<vmem>>, vector<1x4x1xf32>
    %318 = vector.shape_cast %317 : vector<1x4x1xf32> to vector<4x1xf32>
    %319 = vector.broadcast %318 : vector<4x1xf32> to vector<4x256xf32>
    %320 = arith.addf %316, %319 : vector<4x256xf32>
    %cst_193 = arith.constant 0.000000e+00 : f32
    %321 = vector.broadcast %cst_193 : f32 to vector<4x256xf32>
    %322 = arith.subf %321, %320 : vector<4x256xf32>
    %323 = math.exp %322 : vector<4x256xf32>
    %cst_194 = arith.constant 1.000000e+00 : f32
    %324 = vector.broadcast %cst_194 : f32 to vector<4x256xf32>
    %325 = arith.addf %324, %323 : vector<4x256xf32>
    %cst_195 = arith.constant 1.000000e+00 : f32
    %326 = vector.broadcast %cst_195 : f32 to vector<4x256xf32>
    %327 = arith.divf %326, %325 : vector<4x256xf32>
    %328 = arith.mulf %141, %327 : vector<4x256xf32>
    %c0_196 = arith.constant 0 : index
    %c0_197 = arith.constant 0 : index
    %c0_198 = arith.constant 0 : index
    %c0_199 = arith.constant 0 : index
    %329 = vector.load %arg7[%c0_196, %c0_197, %c0_198, %c0_199] : memref<1x1x4x256xf32, #tpu.memory_space<vmem>>, vector<1x1x4x256xf32>
    %330 = vector.shape_cast %329 : vector<1x1x4x256xf32> to vector<4x256xf32>
    %331 = vector.shape_cast %328 : vector<4x256xf32> to vector<1x1x4x256xf32>
    tpu.vector_store %arg7[%c0_196, %c0_197, %c0_198, %c0_199], %331 {strides = array<i32>} : memref<1x1x4x256xf32, #tpu.memory_space<vmem>>, vector<1x1x4x256xf32>,
    return
  }
  func.func @transform_0(%arg0: i32, %arg1: i32) -> (i32, i32, i32, i32) {
    %c0_i32 = arith.constant 0 : i32
    %c0_i32_0 = arith.constant 0 : i32
    %c0_i32_1 = arith.constant 0 : i32
    return %arg1, %arg0, %c0_i32, %c0_i32_0 : i32, i32, i32, i32
  }
  func.func @transform_1(%arg0: i32, %arg1: i32) -> (i32, i32, i32, i32) {
    %c0_i32 = arith.constant 0 : i32
    %c0_i32_0 = arith.constant 0 : i32
    %c0_i32_1 = arith.constant 0 : i32
    %c0_i32_2 = arith.constant 0 : i32
    return %arg0, %c0_i32, %c0_i32_0, %c0_i32_1 : i32, i32, i32, i32
  }
  func.func @transform_2(%arg0: i32, %arg1: i32) -> (i32, i32, i32) {
    %c0_i32 = arith.constant 0 : i32
    %c0_i32_0 = arith.constant 0 : i32
    %c0_i32_1 = arith.constant 0 : i32
    return %arg0, %c0_i32, %c0_i32_0 : i32, i32, i32
  }
  func.func @transform_3(%arg0: i32, %arg1: i32) -> (i32, i32, i32, i32) {
    %c0_i32 = arith.constant 0 : i32
    %c0_i32_0 = arith.constant 0 : i32
    %c0_i32_1 = arith.constant 0 : i32
    %c0_i32_2 = arith.constant 0 : i32
    return %arg0, %c0_i32, %c0_i32_0, %c0_i32_1 : i32, i32, i32, i32
  }
  func.func @transform_4(%arg0: i32, %arg1: i32) -> (i32, i32, i32) {
    %c0_i32 = arith.constant 0 : i32
    %c0_i32_0 = arith.constant 0 : i32
    %c0_i32_1 = arith.constant 0 : i32
    return %arg0, %c0_i32, %c0_i32_0 : i32, i32, i32
  }
  func.func @transform_5(%arg0: i32, %arg1: i32) -> (i32, i32, i32, i32) {
    %c0_i32 = arith.constant 0 : i32
    %c0_i32_0 = arith.constant 0 : i32
    %c0_i32_1 = arith.constant 0 : i32
    return %arg1, %arg0, %c0_i32, %c0_i32_0 : i32, i32, i32, i32
  }
}

</mosaic_0001>

<llo_original>
// kernel: tpu_custom_call.1
$region0: #{tpu_custom_call.1}
  #allocation0 [shape = 'u32[]', space=smem, size = 0x4, offset = 0x4, fixed_abs, tag = 'smem constant byte address 0x4 - core index']
  #allocation1 [shape = 'u32[144,128]{1,0:T(1,128)}', space=vmem, size = 0x12000, scoped, tag = 'internal scratch']
  #allocation2 [shape = 'f32[4,512]{1,0:T(4,128)}', space=vmem, size = 0x2000, scoped, tag = 'scratch operand']
  %s0 = inlined_call_operand.vmem [shape: f32[2,2,4,256], index: 0, kind: input, shape index: {}]
  %s1 = inlined_call_operand.vmem [shape: f32[2,9,4,4], index: 1, kind: input, shape index: {}]
  %s2 = inlined_call_operand.vmem [shape: f32[2,4,1], index: 2, kind: input, shape index: {}]
  %s3 = inlined_call_operand.vmem [shape: f32[2,9,4,4], index: 3, kind: input, shape index: {}]
  %s4 = inlined_call_operand.vmem [shape: f32[2,4,1], index: 4, kind: input, shape index: {}]
  %s5 = inlined_call_operand.hbm [shape: f32[2,2,4,256], index: 5, kind: output, shape index: {}]
  %s6 = sld [smem:[#allocation0]]
  $region53: #{tpu_custom_call.1} parent=0
    _
  %s8 = ssub.s32 1, %s6
  %s9 = scalar_select 0, %s8, %s6
  $region1: #{tpu_custom_call.1} parent=0
    #allocation3 [shape = 'u8[8192]{0}', space=vmem, size = 0x2000, scoped, tag = 'output window, operand 0']
    #allocation4 [shape = 's32[2]{0}', space=sflag, size = 0x8, scoped, tag = 'scoped memory for tpu_custom_call.1']
    %10 = vsyncpa [#allocation4], 0
    %s11 = scalar_lea.sflag [#allocation4], 1
    %12 = vsyncpa %s11, 0
    loop: start=0, step=1, limit=6
    $region2: #{tpu_custom_call.1} parent=1 // loop_pre_header
      _
    $region3: #{tpu_custom_call.1} parent=1 // loop_header
      %s14 = sphi 0, %s18
      %p15 = scmp.ge.s32.totalorder %s14, 6
      %s21 = sphi 0, %s33
      %s22 = sphi 0, %s29
      %s23 = sphi 0, %s21
      %s24 = sphi 0, %s22
      %s25 = sphi 0, %s23
      %s26 = sphi 0, %s24
      %s38 = sphi 0, %s40
      %s41 = sphi 0, %s38
      %s42 = sphi 0, %s41
      %s58 = sphi 0, %s42
      %s64 = sphi 0, %s66
      %s67 = sphi 0, %s64
      %s68 = sphi 0, %s67
      %s84 = sphi 0, %s68
      %s90 = sphi 0, %s92
      %s93 = sphi 0, %s90
      %s94 = sphi 0, %s93
      %s110 = sphi 0, %s94
      %s116 = sphi 0, %s118
      %s119 = sphi 0, %s116
      %s120 = sphi 0, %s119
      %s136 = sphi 0, %s120
      %s142 = sphi 0, %s144
      %s145 = sphi 0, %s142
      %s146 = sphi 0, %s145
      %s162 = sphi 0, %s146
      %s170 = sphi 0, %s172
      %s173 = sphi 0, %s170
      %s174 = sphi 0, %s173
      %s190 = sphi 0, %s174
    $region4: #{tpu_custom_call.1} parent=1 // loop_header_branch
      %17 = sbr.rel (%p15) target = $region8
    $region5: #{tpu_custom_call.1} parent=1 // loop_body
      %s19 = ssub.s32 %s14, 1
      %s20 = ssub.s32 %s14, 2
      %s27 = sadd.s32 1, %s22
      %p28 = scmp.ge.s32.totalorder %s27, 2
      %s29 = scalar_select %p28, 0, %s27
      %s30 = sadd.s32 1, %s21
      %s31 = scalar_select %p28, %s30, %s21
      %p32 = scmp.ge.s32.totalorder %s31, 2
      %s33 = scalar_select %p32, 0, %s31
      %s34 = ssub.s32 %s22, %s29
      %s35 = ssub.s32 %s21, %s33
      %s36 = sor.u32 %s34, %s35
      %p37 = scmp.eq.s32.totalorder %s36, 0
      %s39 = sadd.s32 %s38, 1
      %s40 = scalar_select %p37, %s38, %s39
      %p43 = pneg %p37
      %p44 = scmp.eq.s32.totalorder %s14, 3
      %p45 = por %p43, %p44
      %p46 = scmp.ne.s32.totalorder %s38, %s41
      %p47 = scmp.eq.s32.totalorder %s14, 0
      %p48 = por %p46, %p47
      %p49 = scmp.ne.s32.totalorder %s38, %s41
      %p50 = scmp.eq.s32.totalorder %s19, 3
      %p51 = por %p49, %p50
      %p52 = scmp.ne.s32.totalorder %s41, %s42
      %p53 = scmp.eq.s32.totalorder %s19, 0
      %p54 = por %p52, %p53
      %p55 = scmp.ne.s32.totalorder %s41, %s42
      %p56 = scmp.eq.s32.totalorder %s20, 3
      %p57 = por %p55, %p56
      %p59 = scmp.ne.s32.totalorder %s42, %s58
      %p60 = scmp.eq.s32.totalorder %s20, 0
      %p61 = por %p59, %p60
      %s62 = ssub.s32 %s21, %s33
      %p63 = scmp.eq.s32.totalorder %s62, 0
      %s65 = sadd.s32 %s64, 1
      %s66 = scalar_select %p63, %s64, %s65
      %p69 = pneg %p63
      %p70 = scmp.eq.s32.totalorder %s14, 3
      %p71 = por %p69, %p70
      %p72 = scmp.ne.s32.totalorder %s64, %s67
      %p73 = scmp.eq.s32.totalorder %s14, 0
      %p74 = por %p72, %p73
      %p75 = scmp.ne.s32.totalorder %s64, %s67
      %p76 = scmp.eq.s32.totalorder %s19, 3
      %p77 = por %p75, %p76
      %p78 = scmp.ne.s32.totalorder %s67, %s68
      %p79 = scmp.eq.s32.totalorder %s19, 0
      %p80 = por %p78, %p79
      %p81 = scmp.ne.s32.totalorder %s67, %s68
      %p82 = scmp.eq.s32.totalorder %s20, 3
      %p83 = por %p81, %p82
      %p85 = scmp.ne.s32.totalorder %s68, %s84
      %p86 = scmp.eq.s32.totalorder %s20, 0
      %p87 = por %p85, %p86
      %s88 = ssub.s32 %s21, %s33
      %p89 = scmp.eq.s32.totalorder %s88, 0
      %s91 = sadd.s32 %s90, 1
      %s92 = scalar_select %p89, %s90, %s91
      %p95 = pneg %p89
      %p96 = scmp.eq.s32.totalorder %s14, 3
      %p97 = por %p95, %p96
      %p98 = scmp.ne.s32.totalorder %s90, %s93
      %p99 = scmp.eq.s32.totalorder %s14, 0
      %p100 = por %p98, %p99
      %p101 = scmp.ne.s32.totalorder %s90, %s93
      %p102 = scmp.eq.s32.totalorder %s19, 3
      %p103 = por %p101, %p102
      %p104 = scmp.ne.s32.totalorder %s93, %s94
      %p105 = scmp.eq.s32.totalorder %s19, 0
      %p106 = por %p104, %p105
      %p107 = scmp.ne.s32.totalorder %s93, %s94
      %p108 = scmp.eq.s32.totalorder %s20, 3
      %p109 = por %p107, %p108
      %p111 = scmp.ne.s32.totalorder %s94, %s110
      %p112 = scmp.eq.s32.totalorder %s20, 0
      %p113 = por %p111, %p112
      %s114 = ssub.s32 %s21, %s33
      %p115 = scmp.eq.s32.totalorder %s114, 0
      %s117 = sadd.s32 %s116, 1
      %s118 = scalar_select %p115, %s116, %s117
      %p121 = pneg %p115
      %p122 = scmp.eq.s32.totalorder %s14, 3
      %p123 = por %p121, %p122
      %p124 = scmp.ne.s32.totalorder %s116, %s119
      %p125 = scmp.eq.s32.totalorder %s14, 0
      %p126 = por %p124, %p125
      %p127 = scmp.ne.s32.totalorder %s116, %s119
      %p128 = scmp.eq.s32.totalorder %s19, 3
      %p129 = por %p127, %p128
      %p130 = scmp.ne.s32.totalorder %s119, %s120
      %p131 = scmp.eq.s32.totalorder %s19, 0
      %p132 = por %p130, %p131
      %p133 = scmp.ne.s32.totalorder %s119, %s120
      %p134 = scmp.eq.s32.totalorder %s20, 3
      %p135 = por %p133, %p134
      %p137 = scmp.ne.s32.totalorder %s120, %s136
      %p138 = scmp.eq.s32.totalorder %s20, 0
      %p139 = por %p137, %p138
      %s140 = ssub.s32 %s21, %s33
      %p141 = scmp.eq.s32.totalorder %s140, 0
      %s143 = sadd.s32 %s142, 1
      %s144 = scalar_select %p141, %s142, %s143
      %p147 = pneg %p141
      %p148 = scmp.eq.s32.totalorder %s14, 3
      %p149 = por %p147, %p148
      %p150 = scmp.ne.s32.totalorder %s142, %s145
      %p151 = scmp.eq.s32.totalorder %s14, 0
      %p152 = por %p150, %p151
      %p153 = scmp.ne.s32.totalorder %s142, %s145
      %p154 = scmp.eq.s32.totalorder %s19, 3
      %p155 = por %p153, %p154
      %p156 = scmp.ne.s32.totalorder %s145, %s146
      %p157 = scmp.eq.s32.totalorder %s19, 0
      %p158 = por %p156, %p157
      %p159 = scmp.ne.s32.totalorder %s145, %s146
      %p160 = scmp.eq.s32.totalorder %s20, 3
      %p161 = por %p159, %p160
      %p163 = scmp.ne.s32.totalorder %s146, %s162
      %p164 = scmp.eq.s32.totalorder %s20, 0
      %p165 = por %p163, %p164
      %s166 = ssub.s32 %s22, %s29
      %s167 = ssub.s32 %s21, %s33
      %s168 = sor.u32 %s166, %s167
      %p169 = scmp.eq.s32.totalorder %s168, 0
      %s171 = sadd.s32 %s170, 1
      %s172 = scalar_select %p169, %s170, %s171
      %p175 = pneg %p169
      %p176 = scmp.eq.s32.totalorder %s14, 3
      %p177 = por %p175, %p176
      %p178 = scmp.ne.s32.totalorder %s170, %s173
      %p179 = scmp.eq.s32.totalorder %s14, 0
      %p180 = por %p178, %p179
      %p181 = scmp.ne.s32.totalorder %s170, %s173
      %p182 = scmp.eq.s32.totalorder %s19, 3
      %p183 = por %p181, %p182
      %p184 = scmp.ne.s32.totalorder %s173, %s174
      %p185 = scmp.eq.s32.totalorder %s19, 0
      %p186 = por %p184, %p185
      %p187 = scmp.ne.s32.totalorder %s173, %s174
      %p188 = scmp.eq.s32.totalorder %s20, 3
      %p189 = por %p187, %p188
      %p191 = scmp.ne.s32.totalorder %s174, %s190
      %p192 = scmp.eq.s32.totalorder %s20, 0
      %p193 = por %p191, %p192
      %p194 = scmp.le.s32.totalorder 1, %s14
      %p195 = scmp.lt.s32.totalorder %s14, 5
      %p196 = pnand %p194, %p195
      %p197 = pneg %p196
      // Predicated region
      $region9: #{tpu_custom_call.1} parent=5 // pred_check
        _
      $region10: #{tpu_custom_call.1} parent=5 // pred_check_branch
        %199 = sbr.rel (%p196) target = $region12
      $region11: #{tpu_custom_call.1} parent=5 // pred_region
        %s200 = ssub.s32 %s14, 1
      $region12: #{tpu_custom_call.1} parent=5 // pred_fallthru
        _
      %p201 = scmp.lt.s32.totalorder %s14, 4
      // Predicated region
      $region13: #{tpu_custom_call.1} parent=5 // pred_check
        %p202 = pneg %p201
      $region14: #{tpu_custom_call.1} parent=5 // pred_check_branch
        %204 = sbr.rel (%p202) target = $region16
      $region15: #{tpu_custom_call.1} parent=5 // pred_region
        // Predicated region
        $region17: #{tpu_custom_call.1} parent=15 // pred_check
          %p205 = pneg %p48
        $region18: #{tpu_custom_call.1} parent=15 // pred_check_branch
          %207 = sbr.rel (%p205) target = $region20
        $region19: #{tpu_custom_call.1} parent=15 // pred_region
          %p208 = scmp.lt.s32.totalorder %s22, 1
          %s209 = scalar_select %p208, %s22, 1
          %p210 = scmp.lt.s32.totalorder %s21, 1
          %s211 = scalar_select %p210, %s21, 1
          %s212 = smul.addr %s211, 2
          %s213 = smul.addr %s209, 4
          %s214 = sadd.s32 %s212, %s213
          %s215 = smul.addr %s214, 4
          %s216 = scalar_lea.vmem %s0, %s215
        $region20: #{tpu_custom_call.1} parent=15 // pred_fallthru
          _
        // Predicated region
        $region21: #{tpu_custom_call.1} parent=15 // pred_check
          %p217 = pneg %p74
        $region22: #{tpu_custom_call.1} parent=15 // pred_check_branch
          %219 = sbr.rel (%p217) target = $region24
        $region23: #{tpu_custom_call.1} parent=15 // pred_region
          %p220 = scmp.lt.s32.totalorder %s21, 1
          %s221 = scalar_select %p220, %s21, 1
          %s222 = smul.addr %s221, 9
          %s223 = smul.addr %s222, 4
          %s224 = scalar_lea.vmem %s1, %s223
        $region24: #{tpu_custom_call.1} parent=15 // pred_fallthru
          _
        // Predicated region
        $region25: #{tpu_custom_call.1} parent=15 // pred_check
          %p225 = pneg %p100
        $region26: #{tpu_custom_call.1} parent=15 // pred_check_branch
          %227 = sbr.rel (%p225) target = $region28
        $region27: #{tpu_custom_call.1} parent=15 // pred_region
          %p228 = scmp.lt.s32.totalorder %s21, 1
          %s229 = scalar_select %p228, %s21, 1
          %s230 = smul.addr %s229, 4
          %s231 = scalar_lea.vmem %s2, %s230
        $region28: #{tpu_custom_call.1} parent=15 // pred_fallthru
          _
        // Predicated region
        $region29: #{tpu_custom_call.1} parent=15 // pred_check
          %p232 = pneg %p126
        $region30: #{tpu_custom_call.1} parent=15 // pred_check_branch
          %234 = sbr.rel (%p232) target = $region32
        $region31: #{tpu_custom_call.1} parent=15 // pred_region
          %p235 = scmp.lt.s32.totalorder %s21, 1
          %s236 = scalar_select %p235, %s21, 1
          %s237 = smul.addr %s236, 9
          %s238 = smul.addr %s237, 4
          %s239 = scalar_lea.vmem %s3, %s238
        $region32: #{tpu_custom_call.1} parent=15 // pred_fallthru
          _
        // Predicated region
        $region33: #{tpu_custom_call.1} parent=15 // pred_check
          %p240 = pneg %p152
        $region34: #{tpu_custom_call.1} parent=15 // pred_check_branch
          %242 = sbr.rel (%p240) target = $region36
        $region35: #{tpu_custom_call.1} parent=15 // pred_region
          %p243 = scmp.lt.s32.totalorder %s21, 1
          %s244 = scalar_select %p243, %s21, 1
          %s245 = smul.addr %s244, 4
          %s246 = scalar_lea.vmem %s4, %s245
        $region36: #{tpu_custom_call.1} parent=15 // pred_fallthru
          _
      $region16: #{tpu_custom_call.1} parent=5 // pred_fallthru
        _
      %p247 = scmp.le.s32.totalorder 1, %s14
      %p248 = scmp.lt.s32.totalorder %s14, 5
      %p249 = pnand %p247, %p248
      %p250 = pneg %p249
      // Predicated region
      $region37: #{tpu_custom_call.1} parent=5 // pred_check
        _
      $region38: #{tpu_custom_call.1} parent=5 // pred_check_branch
        %252 = sbr.rel (%p249) target = $region40
      $region39: #{tpu_custom_call.1} parent=5 // pred_region
        %s253 = ssub.s32 %s14, 1
        %p254 = scmp.lt.s32.totalorder %s24, 1
        %s255 = scalar_select %p254, %s24, 1
        %p256 = scmp.lt.s32.totalorder %s23, 1
        %s257 = scalar_select %p256, %s23, 1
        %s258 = smul.addr %s257, 2
        %s259 = smul.addr %s255, 4
        %s260 = sadd.s32 %s258, %s259
        %s261 = smul.addr %s260, 4
        %s262 = scalar_lea.vmem %s0, %s261
        %p263 = pneg %p54
        %p264 = pneg %p51
        %p265 = scmp.lt.s32.totalorder %s23, 1
        %s266 = scalar_select %p265, %s23, 1
        %s267 = smul.addr %s266, 9
        %s268 = smul.addr %s267, 4
        %s269 = scalar_lea.vmem %s1, %s268
        %p270 = pneg %p80
        %p271 = pneg %p77
        %p272 = scmp.lt.s32.totalorder %s23, 1
        %s273 = scalar_select %p272, %s23, 1
        %s274 = smul.addr %s273, 4
        %s275 = scalar_lea.vmem %s2, %s274
        %p276 = pneg %p106
        %p277 = pneg %p103
        %p278 = scmp.lt.s32.totalorder %s23, 1
        %s279 = scalar_select %p278, %s23, 1
        %s280 = smul.addr %s279, 9
        %s281 = smul.addr %s280, 4
        %s282 = scalar_lea.vmem %s3, %s281
        %p283 = pneg %p132
        %p284 = pneg %p129
        %p285 = scmp.lt.s32.totalorder %s23, 1
        %s286 = scalar_select %p285, %s23, 1
        %s287 = smul.addr %s286, 4
        %s288 = scalar_lea.vmem %s4, %s287
        %p289 = pneg %p158
        %p290 = pneg %p155
        %p291 = pneg %p186
        %p292 = pneg %p183
        %s293 = sand.u32 %s173, 1
        %s294 = scalar_lea.sflag [#allocation4], %s293
        %s295 = sand.u32 %s173, 1
        %s296 = smul.addr %s295, 8
        %s297 = scalar_lea.vmem [#allocation3], %s296
        %p298 = scmp.lt.s32.totalorder %s24, 1
        %s299 = scalar_select %p298, %s24, 1
        %p300 = scmp.lt.s32.totalorder %s23, 1
        %s301 = scalar_select %p300, %s23, 1
        %s302 = smul.addr %s301, 2
        %s303 = smul.addr %s299, 4
        %s304 = sadd.s32 %s302, %s303
        %s305 = smul.addr %s304, 4
        %s306 = scalar_lea.vmem %s0, %s305
        %p307 = scmp.lt.s32.totalorder %s23, 1
        %s308 = scalar_select %p307, %s23, 1
        %s309 = smul.addr %s308, 9
        %s310 = smul.addr %s309, 4
        %s311 = scalar_lea.vmem %s1, %s310
        %p312 = scmp.lt.s32.totalorder %s23, 1
        %s313 = scalar_select %p312, %s23, 1
        %s314 = smul.addr %s313, 4
        %s315 = scalar_lea.vmem %s2, %s314
        %p316 = scmp.lt.s32.totalorder %s23, 1
        %s317 = scalar_select %p316, %s23, 1
        %s318 = smul.addr %s317, 9
        %s319 = smul.addr %s318, 4
        %s320 = scalar_lea.vmem %s3, %s319
        %p321 = scmp.lt.s32.totalorder %s23, 1
        %s322 = scalar_select %p321, %s23, 1
        %s323 = smul.addr %s322, 4
        %s324 = scalar_lea.vmem %s4, %s323
        %v325 = vlaneseq
        %v326 = vand.u32 %v325, 127
        %v327 = vadd.s32 %v326, 128
        %v328 = vshra.s32 %v326, 4
        %v329 = vshra.s32 %v327, 4
        %v330 = vand.u32 %v326, 15
        %v331 = vand.u32 %v327, 15
        %v332 = vadd.s32 %v328, 4294967295
        %v333 = vadd.s32 %v329, 4294967295
        %v334 = vadd.s32 %v330, 4294967295
        %v335 = vadd.s32 %v331, 4294967295
        %vm336 = vcmp.ge.s32.totalorder %v332, 0
        %vm337 = vcmp.ge.s32.totalorder %v333, 0
        %vm338 = vcmp.lt.s32.totalorder %v332, 16
        %vm339 = vcmp.lt.s32.totalorder %v333, 16
        %vm340 = vmand %vm336, %vm338
        %vm341 = vmand %vm337, %vm339
        %vm342 = vcmp.ge.s32.totalorder %v334, 0
        %vm343 = vcmp.ge.s32.totalorder %v335, 0
        %vm344 = vmand %vm340, %vm342
        %vm345 = vmand %vm341, %vm343
        %vm346 = vcmp.lt.s32.totalorder %v334, 16
        %vm347 = vcmp.lt.s32.totalorder %v335, 16
        %vm348 = vmand %vm344, %vm346
        %vm349 = vmand %vm345, %vm347
        %vm350 = vcmp.ge.s32.totalorder %v330, 0
        %vm351 = vcmp.ge.s32.totalorder %v331, 0
        %vm352 = vmand %vm340, %vm350
        %vm353 = vmand %vm341, %vm351
        %vm354 = vcmp.lt.s32.totalorder %v330, 16
        %vm355 = vcmp.lt.s32.totalorder %v331, 16
        %vm356 = vmand %vm352, %vm354
        %vm357 = vmand %vm353, %vm355
        %v358 = vadd.s32 %v330, 1
        %v359 = vadd.s32 %v331, 1
        %vm360 = vcmp.ge.s32.totalorder %v358, 0
        %vm361 = vcmp.ge.s32.totalorder %v359, 0
        %vm362 = vmand %vm340, %vm360
        %vm363 = vmand %vm341, %vm361
        %vm364 = vcmp.lt.s32.totalorder %v358, 16
        %vm365 = vcmp.lt.s32.totalorder %v359, 16
        %vm366 = vmand %vm362, %vm364
        %vm367 = vmand %vm363, %vm365
        %vm368 = vcmp.ge.s32.totalorder %v328, 0
        %vm369 = vcmp.ge.s32.totalorder %v329, 0
        %vm370 = vcmp.lt.s32.totalorder %v328, 16
        %vm371 = vcmp.lt.s32.totalorder %v329, 16
        %vm372 = vmand %vm368, %vm370
        %vm373 = vmand %vm369, %vm371
        %vm374 = vmand %vm372, %vm342
        %vm375 = vmand %vm373, %vm343
        %vm376 = vmand %vm374, %vm346
        %vm377 = vmand %vm375, %vm347
        %vm378 = vmand %vm372, %vm350
        %vm379 = vmand %vm373, %vm351
        %vm380 = vmand %vm378, %vm354
        %vm381 = vmand %vm379, %vm355
        %vm382 = vmand %vm372, %vm360
        %vm383 = vmand %vm373, %vm361
        %vm384 = vmand %vm382, %vm364
        %vm385 = vmand %vm383, %vm365
        %v386 = vadd.s32 %v328, 1
        %v387 = vadd.s32 %v329, 1
        %vm388 = vcmp.ge.s32.totalorder %v386, 0
        %vm389 = vcmp.ge.s32.totalorder %v387, 0
        %vm390 = vcmp.lt.s32.totalorder %v386, 16
        %vm391 = vcmp.lt.s32.totalorder %v387, 16
        %vm392 = vmand %vm388, %vm390
        %vm393 = vmand %vm389, %vm391
        %vm394 = vmand %vm392, %vm342
        %vm395 = vmand %vm393, %vm343
        %vm396 = vmand %vm394, %vm346
        %vm397 = vmand %vm395, %vm347
        %vm398 = vmand %vm392, %vm350
        %vm399 = vmand %vm393, %vm351
        %vm400 = vmand %vm398, %vm354
        %vm401 = vmand %vm399, %vm355
        %vm402 = vmand %vm392, %vm360
        %vm403 = vmand %vm393, %vm361
        %vm404 = vmand %vm402, %vm364
        %vm405 = vmand %vm403, %vm365
        %v406 = vld [vmem:[%s306] sm:$0xff]
        %407 = vst [vmem:[#allocation2 + $0x4] sm:$0xff] %v406
        %v408 = vld [vmem:[#allocation2] sm:$0xff]
        %v409 = vld [vmem:[#allocation2 + $0x8] sm:$0xf]
        %v410 = vsel %vm348, 1, 0
        %v411 = vsel %vm349, 1, 0
        %vm412 = vcmp.eq.s32.totalorder %v410, 1
        %vm413 = vcmp.eq.s32.totalorder %v411, 1
        %v416 = vcombine.high %v408, %v408
        %417 = vrot.lane.b32.xlu0 %v408, 17
        %v418 = vpop.permute.xlu0 %417
        %419 = vrot.lane.b32.xlu0 %v416, 17
        %v420 = vpop.permute.xlu0 %419
        %421 = vrot.lane.b32.xlu0 %v409, 17
        %v422 = vpop.permute.xlu0 %421
        %vm423 = vcmask 138240
        %v424 = vsel %vm423, %v418, %v420
        %v425 = vsel %vm423, %v420, %v422
        %v428 = vsel %vm412, %v424, 0.0
        %v429 = vsel %vm413, %v425, 0.0
        %v430 = vld [vmem:[%s311] sm:$0xf]
        %v431 = vsel %vm356, 1, 0
        %v432 = vsel %vm357, 1, 0
        %vm433 = vcmp.eq.s32.totalorder %v431, 1
        %vm434 = vcmp.eq.s32.totalorder %v432, 1
        %435 = vrot.lane.b32.xlu0 %v408, 16
        %v436 = vpop.permute.xlu0 %435
        %437 = vrot.lane.b32.xlu0 %v416, 16
        %v438 = vpop.permute.xlu0 %437
        %439 = vrot.lane.b32.xlu0 %v409, 16
        %v440 = vpop.permute.xlu0 %439
        %vm441 = vcmask 130048
        %v442 = vsel %vm441, %v436, %v438
        %v443 = vsel %vm441, %v438, %v440
        %v446 = vsel %vm433, %v442, 0.0
        %v447 = vsel %vm434, %v443, 0.0
        %s448 = scalar_lea.vmem %s311, 4
        %v449 = vld [vmem:[%s448] sm:$0xf]
        %vm450 = vcmask 31744
        %v452 = vsel %vm450, %v449, 0
        %vm454 = vcmask 1043456
        %v456 = vsel %vm454, %v446, 0
        %v459 = vsel %vm454, %v447, 0
        %461 = vmatprep.subr.mxu0 0.0
        %462 = vmatpush1.msra.mxu0 0.0
        %463 = vmatprep.subr.mxu0 0.0
        %464 = vmatpush1.msra.mxu0 0.0
        %465 = vmatprep.subr.mxu0 0.0
        %466 = vmatpush1.msra.mxu0 0.0
        %467 = vmatprep.subr.mxu0 0.0
        %468 = vmatpush1.msra.mxu0 0.0
        %469 = vmatprep.subr.mxu0 0.0
        %470 = vmatpush1.msra.mxu0 0.0
        %471 = vmatprep.subr.mxu0 0.0
        %472 = vmatpush1.msra.mxu0 0.0
        %473 = vmatprep.subr.mxu0 0.0
        %474 = vmatpush1.msra.mxu0 0.0
        %475 = vmatprep.subr.mxu0 0.0
        %476 = vmatpush1.msra.mxu0 0.0
        %477 = vmatprep.subr.mxu0 0.0
        %478 = vmatpush1.msra.mxu0 0.0
        %479 = vmatprep.subr.mxu0 0.0
        %480 = vmatpush1.msra.mxu0 0.0
        %481 = vmatprep.subr.mxu0 0.0
        %482 = vmatpush1.msra.mxu0 0.0
        %483 = vmatprep.subr.mxu0 0.0
        %484 = vmatpush1.msra.mxu0 0.0
        %485 = vmatprep.subr.mxu0 0.0
        %486 = vmatpush1.msra.mxu0 0.0
        %487 = vmatprep.subr.mxu0 0.0
        %488 = vmatpush1.msra.mxu0 0.0
        %489 = vmatprep.subr.mxu0 0.0
        %490 = vmatpush1.msra.mxu0 0.0
        %491 = vmatprep.subr.mxu0 %v459
        %492 = vmatpush1.msra.mxu0 %v456
        %493 = vmatprep.subr.mxu0 0.0
        %494 = vmatpush2.msra.mxu0 0.0
        %495 = vmatprep.subr.mxu0 0.0
        %496 = vmatpush2.msra.mxu0 0.0
        %497 = vmatprep.subr.mxu0 0.0
        %498 = vmatpush2.msra.mxu0 0.0
        %499 = vmatprep.subr.mxu0 0.0
        %500 = vmatpush2.msra.mxu0 0.0
        %501 = vmatprep.subr.mxu0 0.0
        %502 = vmatpush2.msra.mxu0 0.0
        %503 = vmatprep.subr.mxu0 0.0
        %504 = vmatpush2.msra.mxu0 0.0
        %505 = vmatprep.subr.mxu0 0.0
        %506 = vmatpush2.msra.mxu0 0.0
        %507 = vmatprep.subr.mxu0 0.0
        %508 = vmatpush2.msra.mxu0 0.0
        %509 = vmatprep.subr.mxu0 0.0
        %510 = vmatpush2.msra.mxu0 0.0
        %511 = vmatprep.subr.mxu0 0.0
        %512 = vmatpush2.msra.mxu0 0.0
        %513 = vmatprep.subr.mxu0 0.0
        %514 = vmatpush2.msra.mxu0 0.0
        %515 = vmatprep.subr.mxu0 0.0
        %516 = vmatpush2.msra.mxu0 0.0
        %517 = vmatprep.subr.mxu0 0.0
        %518 = vmatpush2.msra.mxu0 0.0
        %519 = vmatprep.subr.mxu0 0.0
        %520 = vmatpush2.msra.mxu0 0.0
        %521 = vmatprep.subr.mxu0 0.0
        %522 = vmatpush2.msra.mxu0 0.0
        %523 = vmatprep.subr.mxu0 0.0
        %524 = vmatpush2.msra.mxu0 0.0
        %525 = vmatprep.mubr.f32.mxu0 0.0
        %526 = vmatmul.mubr.f32.gmra.mxu0 %v452
        %v527 = vpop.f32.mrf.mxu0
        %v528 = vadd.f32 0.0, %v527
        %v529 = vpop.f32.mrf.mxu0
        %v530 = vadd.f32 0.0, %v529
        %531 = vdwg.mxu0
        %v533 = vsel %vm450, %v430, 0
        %v536 = vsel %vm454, %v428, 0
        %v539 = vsel %vm454, %v429, 0
        %541 = vmatprep.subr.mxu0 0.0
        %542 = vmatpush1.msra.mxu0 0.0
        %543 = vmatprep.subr.mxu0 0.0
        %544 = vmatpush1.msra.mxu0 0.0
        %545 = vmatprep.subr.mxu0 0.0
        %546 = vmatpush1.msra.mxu0 0.0
        %547 = vmatprep.subr.mxu0 0.0
        %548 = vmatpush1.msra.mxu0 0.0
        %549 = vmatprep.subr.mxu0 0.0
        %550 = vmatpush1.msra.mxu0 0.0
        %551 = vmatprep.subr.mxu0 0.0
        %552 = vmatpush1.msra.mxu0 0.0
        %553 = vmatprep.subr.mxu0 0.0
        %554 = vmatpush1.msra.mxu0 0.0
        %555 = vmatprep.subr.mxu0 0.0
        %556 = vmatpush1.msra.mxu0 0.0
        %557 = vmatprep.subr.mxu0 0.0
        %558 = vmatpush1.msra.mxu0 0.0
        %559 = vmatprep.subr.mxu0 0.0
        %560 = vmatpush1.msra.mxu0 0.0
        %561 = vmatprep.subr.mxu0 0.0
        %562 = vmatpush1.msra.mxu0 0.0
        %563 = vmatprep.subr.mxu0 0.0
        %564 = vmatpush1.msra.mxu0 0.0
        %565 = vmatprep.subr.mxu0 0.0
        %566 = vmatpush1.msra.mxu0 0.0
        %567 = vmatprep.subr.mxu0 0.0
        %568 = vmatpush1.msra.mxu0 0.0
        %569 = vmatprep.subr.mxu0 0.0
        %570 = vmatpush1.msra.mxu0 0.0
        %571 = vmatprep.subr.mxu0 %v539
        %572 = vmatpush1.msra.mxu0 %v536
        %573 = vmatprep.subr.mxu0 0.0
        %574 = vmatpush2.msra.mxu0 0.0
        %575 = vmatprep.subr.mxu0 0.0
        %576 = vmatpush2.msra.mxu0 0.0
        %577 = vmatprep.subr.mxu0 0.0
        %578 = vmatpush2.msra.mxu0 0.0
        %579 = vmatprep.subr.mxu0 0.0
        %580 = vmatpush2.msra.mxu0 0.0
        %581 = vmatprep.subr.mxu0 0.0
        %582 = vmatpush2.msra.mxu0 0.0
        %583 = vmatprep.subr.mxu0 0.0
        %584 = vmatpush2.msra.mxu0 0.0
        %585 = vmatprep.subr.mxu0 0.0
        %586 = vmatpush2.msra.mxu0 0.0
        %587 = vmatprep.subr.mxu0 0.0
        %588 = vmatpush2.msra.mxu0 0.0
        %589 = vmatprep.subr.mxu0 0.0
        %590 = vmatpush2.msra.mxu0 0.0
        %591 = vmatprep.subr.mxu0 0.0
        %592 = vmatpush2.msra.mxu0 0.0
        %593 = vmatprep.subr.mxu0 0.0
        %594 = vmatpush2.msra.mxu0 0.0
        %595 = vmatprep.subr.mxu0 0.0
        %596 = vmatpush2.msra.mxu0 0.0
        %597 = vmatprep.subr.mxu0 0.0
        %598 = vmatpush2.msra.mxu0 0.0
        %599 = vmatprep.subr.mxu0 0.0
        %600 = vmatpush2.msra.mxu0 0.0
        %601 = vmatprep.subr.mxu0 0.0
        %602 = vmatpush2.msra.mxu0 0.0
        %603 = vmatprep.subr.mxu0 0.0
        %604 = vmatpush2.msra.mxu0 0.0
        %605 = vmatprep.mubr.f32.mxu0 0.0
        %606 = vmatmul.mubr.f32.gmra.mxu0 %v533
        %v607 = vpop.f32.mrf.mxu0
        %v608 = vadd.f32 %v528, %v607
        %v609 = vpop.f32.mrf.mxu0
        %v610 = vadd.f32 %v530, %v609
        %611 = vdwg.mxu0
        %v612 = vld [vmem:[#allocation2] sm:$0xff]
        %v613 = vld [vmem:[#allocation2 + $0x8] sm:$0xf]
        %v614 = vsel %vm366, 1, 0
        %v615 = vsel %vm367, 1, 0
        %vm616 = vcmp.eq.s32.totalorder %v614, 1
        %vm617 = vcmp.eq.s32.totalorder %v615, 1
        %v620 = vcombine.high %v612, %v612
        %621 = vrot.lane.b32.xlu0 %v612, 15
        %v622 = vpop.permute.xlu0 %621
        %623 = vrot.lane.b32.xlu0 %v620, 15
        %v624 = vpop.permute.xlu0 %623
        %625 = vrot.lane.b32.xlu0 %v613, 15
        %v626 = vpop.permute.xlu0 %625
        %vm627 = vcmask 121856
        %v628 = vsel %vm627, %v622, %v624
        %v629 = vsel %vm627, %v624, %v626
        %v632 = vsel %vm616, %v628, 0.0
        %v633 = vsel %vm617, %v629, 0.0
        %s634 = scalar_lea.vmem %s311, 8
        %v635 = vld [vmem:[%s634] sm:$0xf]
        %v637 = vsel %vm450, %v635, 0
        %v640 = vsel %vm454, %v632, 0
        %v643 = vsel %vm454, %v633, 0
        %645 = vmatprep.subr.mxu0 0.0
        %646 = vmatpush1.msra.mxu0 0.0
        %647 = vmatprep.subr.mxu0 0.0
        %648 = vmatpush1.msra.mxu0 0.0
        %649 = vmatprep.subr.mxu0 0.0
        %650 = vmatpush1.msra.mxu0 0.0
        %651 = vmatprep.subr.mxu0 0.0
        %652 = vmatpush1.msra.mxu0 0.0
        %653 = vmatprep.subr.mxu0 0.0
        %654 = vmatpush1.msra.mxu0 0.0
        %655 = vmatprep.subr.mxu0 0.0
        %656 = vmatpush1.msra.mxu0 0.0
        %657 = vmatprep.subr.mxu0 0.0
        %658 = vmatpush1.msra.mxu0 0.0
        %659 = vmatprep.subr.mxu0 0.0
        %660 = vmatpush1.msra.mxu0 0.0
        %661 = vmatprep.subr.mxu0 0.0
        %662 = vmatpush1.msra.mxu0 0.0
        %663 = vmatprep.subr.mxu0 0.0
        %664 = vmatpush1.msra.mxu0 0.0
        %665 = vmatprep.subr.mxu0 0.0
        %666 = vmatpush1.msra.mxu0 0.0
        %667 = vmatprep.subr.mxu0 0.0
        %668 = vmatpush1.msra.mxu0 0.0
        %669 = vmatprep.subr.mxu0 0.0
        %670 = vmatpush1.msra.mxu0 0.0
        %671 = vmatprep.subr.mxu0 0.0
        %672 = vmatpush1.msra.mxu0 0.0
        %673 = vmatprep.subr.mxu0 0.0
        %674 = vmatpush1.msra.mxu0 0.0
        %675 = vmatprep.subr.mxu0 %v643
        %676 = vmatpush1.msra.mxu0 %v640
        %677 = vmatprep.subr.mxu0 0.0
        %678 = vmatpush2.msra.mxu0 0.0
        %679 = vmatprep.subr.mxu0 0.0
        %680 = vmatpush2.msra.mxu0 0.0
        %681 = vmatprep.subr.mxu0 0.0
        %682 = vmatpush2.msra.mxu0 0.0
        %683 = vmatprep.subr.mxu0 0.0
        %684 = vmatpush2.msra.mxu0 0.0
        %685 = vmatprep.subr.mxu0 0.0
        %686 = vmatpush2.msra.mxu0 0.0
        %687 = vmatprep.subr.mxu0 0.0
        %688 = vmatpush2.msra.mxu0 0.0
        %689 = vmatprep.subr.mxu0 0.0
        %690 = vmatpush2.msra.mxu0 0.0
        %691 = vmatprep.subr.mxu0 0.0
        %692 = vmatpush2.msra.mxu0 0.0
        %693 = vmatprep.subr.mxu0 0.0
        %694 = vmatpush2.msra.mxu0 0.0
        %695 = vmatprep.subr.mxu0 0.0
        %696 = vmatpush2.msra.mxu0 0.0
        %697 = vmatprep.subr.mxu0 0.0
        %698 = vmatpush2.msra.mxu0 0.0
        %699 = vmatprep.subr.mxu0 0.0
        %700 = vmatpush2.msra.mxu0 0.0
        %701 = vmatprep.subr.mxu0 0.0
        %702 = vmatpush2.msra.mxu0 0.0
        %703 = vmatprep.subr.mxu0 0.0
        %704 = vmatpush2.msra.mxu0 0.0
        %705 = vmatprep.subr.mxu0 0.0
        %706 = vmatpush2.msra.mxu0 0.0
        %707 = vmatprep.subr.mxu0 0.0
        %708 = vmatpush2.msra.mxu0 0.0
        %709 = vmatprep.mubr.f32.mxu0 0.0
        %710 = vmatmul.mubr.f32.gmra.mxu0 %v637
        %v711 = vpop.f32.mrf.mxu0
        %v712 = vadd.f32 0.0, %v711
        %v713 = vpop.f32.mrf.mxu0
        %v714 = vadd.f32 0.0, %v713
        %715 = vdwg.mxu0
        %v716 = vadd.f32 %v608, %v712
        %v717 = vadd.f32 %v610, %v714
        %v718 = vld [vmem:[#allocation2] sm:$0xff]
        %v719 = vld [vmem:[#allocation2 + $0x8] sm:$0xf]
        %v720 = vsel %vm376, 1, 0
        %v721 = vsel %vm377, 1, 0
        %vm722 = vcmp.eq.s32.totalorder %v720, 1
        %vm723 = vcmp.eq.s32.totalorder %v721, 1
        %v726 = vcombine.high %v718, %v718
        %727 = vrot.lane.b32.xlu0 %v718, 1
        %v728 = vpop.permute.xlu0 %727
        %729 = vrot.lane.b32.xlu0 %v726, 1
        %v730 = vpop.permute.xlu0 %729
        %731 = vrot.lane.b32.xlu0 %v719, 1
        %v732 = vpop.permute.xlu0 %731
        %vm733 = vcmask 7168
        %v734 = vsel %vm733, %v728, %v730
        %v735 = vsel %vm733, %v730, %v732
        %v738 = vsel %vm722, %v734, 0.0
        %v739 = vsel %vm723, %v735, 0.0
        %s740 = scalar_lea.vmem %s311, 12
        %v741 = vld [vmem:[%s740] sm:$0xf]
        %v743 = vsel %vm450, %v741, 0
        %v746 = vsel %vm454, %v738, 0
        %v749 = vsel %vm454, %v739, 0
        %751 = vmatprep.subr.mxu0 0.0
        %752 = vmatpush1.msra.mxu0 0.0
        %753 = vmatprep.subr.mxu0 0.0
        %754 = vmatpush1.msra.mxu0 0.0
        %755 = vmatprep.subr.mxu0 0.0
        %756 = vmatpush1.msra.mxu0 0.0
        %757 = vmatprep.subr.mxu0 0.0
        %758 = vmatpush1.msra.mxu0 0.0
        %759 = vmatprep.subr.mxu0 0.0
        %760 = vmatpush1.msra.mxu0 0.0
        %761 = vmatprep.subr.mxu0 0.0
        %762 = vmatpush1.msra.mxu0 0.0
        %763 = vmatprep.subr.mxu0 0.0
        %764 = vmatpush1.msra.mxu0 0.0
        %765 = vmatprep.subr.mxu0 0.0
        %766 = vmatpush1.msra.mxu0 0.0
        %767 = vmatprep.subr.mxu0 0.0
        %768 = vmatpush1.msra.mxu0 0.0
        %769 = vmatprep.subr.mxu0 0.0
        %770 = vmatpush1.msra.mxu0 0.0
        %771 = vmatprep.subr.mxu0 0.0
        %772 = vmatpush1.msra.mxu0 0.0
        %773 = vmatprep.subr.mxu0 0.0
        %774 = vmatpush1.msra.mxu0 0.0
        %775 = vmatprep.subr.mxu0 0.0
        %776 = vmatpush1.msra.mxu0 0.0
        %777 = vmatprep.subr.mxu0 0.0
        %778 = vmatpush1.msra.mxu0 0.0
        %779 = vmatprep.subr.mxu0 0.0
        %780 = vmatpush1.msra.mxu0 0.0
        %781 = vmatprep.subr.mxu0 %v749
        %782 = vmatpush1.msra.mxu0 %v746
        %783 = vmatprep.subr.mxu0 0.0
        %784 = vmatpush2.msra.mxu0 0.0
        %785 = vmatprep.subr.mxu0 0.0
        %786 = vmatpush2.msra.mxu0 0.0
        %787 = vmatprep.subr.mxu0 0.0
        %788 = vmatpush2.msra.mxu0 0.0
        %789 = vmatprep.subr.mxu0 0.0
        %790 = vmatpush2.msra.mxu0 0.0
        %791 = vmatprep.subr.mxu0 0.0
        %792 = vmatpush2.msra.mxu0 0.0
        %793 = vmatprep.subr.mxu0 0.0
        %794 = vmatpush2.msra.mxu0 0.0
        %795 = vmatprep.subr.mxu0 0.0
        %796 = vmatpush2.msra.mxu0 0.0
        %797 = vmatprep.subr.mxu0 0.0
        %798 = vmatpush2.msra.mxu0 0.0
        %799 = vmatprep.subr.mxu0 0.0
        %800 = vmatpush2.msra.mxu0 0.0
        %801 = vmatprep.subr.mxu0 0.0
        %802 = vmatpush2.msra.mxu0 0.0
        %803 = vmatprep.subr.mxu0 0.0
        %804 = vmatpush2.msra.mxu0 0.0
        %805 = vmatprep.subr.mxu0 0.0
        %806 = vmatpush2.msra.mxu0 0.0
        %807 = vmatprep.subr.mxu0 0.0
        %808 = vmatpush2.msra.mxu0 0.0
        %809 = vmatprep.subr.mxu0 0.0
        %810 = vmatpush2.msra.mxu0 0.0
        %811 = vmatprep.subr.mxu0 0.0
        %812 = vmatpush2.msra.mxu0 0.0
        %813 = vmatprep.subr.mxu0 0.0
        %814 = vmatpush2.msra.mxu0 0.0
        %815 = vmatprep.mubr.f32.mxu0 0.0
        %816 = vmatmul.mubr.f32.gmra.mxu0 %v743
        %v817 = vpop.f32.mrf.mxu0
        %v818 = vadd.f32 0.0, %v817
        %v819 = vpop.f32.mrf.mxu0
        %v820 = vadd.f32 0.0, %v819
        %821 = vdwg.mxu0
        %v822 = vadd.f32 %v716, %v818
        %v823 = vadd.f32 %v717, %v820
        %v824 = vld [vmem:[#allocation2 + $0x4] sm:$0xff]
        %v825 = vsel %vm380, 1, 0
        %v826 = vsel %vm381, 1, 0
        %vm827 = vcmp.eq.s32.totalorder %v825, 1
        %vm828 = vcmp.eq.s32.totalorder %v826, 1
        %v830 = vcombine.high %v824, %v824
        %v832 = vsel %vm827, %v824, 0.0
        %v833 = vsel %vm828, %v830, 0.0
        %s834 = scalar_lea.vmem %s311, 16
        %v835 = vld [vmem:[%s834] sm:$0xf]
        %v837 = vsel %vm450, %v835, 0
        %v840 = vsel %vm454, %v832, 0
        %v843 = vsel %vm454, %v833, 0
        %845 = vmatprep.subr.mxu0 0.0
        %846 = vmatpush1.msra.mxu0 0.0
        %847 = vmatprep.subr.mxu0 0.0
        %848 = vmatpush1.msra.mxu0 0.0
        %849 = vmatprep.subr.mxu0 0.0
        %850 = vmatpush1.msra.mxu0 0.0
        %851 = vmatprep.subr.mxu0 0.0
        %852 = vmatpush1.msra.mxu0 0.0
        %853 = vmatprep.subr.mxu0 0.0
        %854 = vmatpush1.msra.mxu0 0.0
        %855 = vmatprep.subr.mxu0 0.0
        %856 = vmatpush1.msra.mxu0 0.0
        %857 = vmatprep.subr.mxu0 0.0
        %858 = vmatpush1.msra.mxu0 0.0
        %859 = vmatprep.subr.mxu0 0.0
        %860 = vmatpush1.msra.mxu0 0.0
        %861 = vmatprep.subr.mxu0 0.0
        %862 = vmatpush1.msra.mxu0 0.0
        %863 = vmatprep.subr.mxu0 0.0
        %864 = vmatpush1.msra.mxu0 0.0
        %865 = vmatprep.subr.mxu0 0.0
        %866 = vmatpush1.msra.mxu0 0.0
        %867 = vmatprep.subr.mxu0 0.0
        %868 = vmatpush1.msra.mxu0 0.0
        %869 = vmatprep.subr.mxu0 0.0
        %870 = vmatpush1.msra.mxu0 0.0
        %871 = vmatprep.subr.mxu0 0.0
        %872 = vmatpush1.msra.mxu0 0.0
        %873 = vmatprep.subr.mxu0 0.0
        %874 = vmatpush1.msra.mxu0 0.0
        %875 = vmatprep.subr.mxu0 %v843
        %876 = vmatpush1.msra.mxu0 %v840
        %877 = vmatprep.subr.mxu0 0.0
        %878 = vmatpush2.msra.mxu0 0.0
        %879 = vmatprep.subr.mxu0 0.0
        %880 = vmatpush2.msra.mxu0 0.0
        %881 = vmatprep.subr.mxu0 0.0
        %882 = vmatpush2.msra.mxu0 0.0
        %883 = vmatprep.subr.mxu0 0.0
        %884 = vmatpush2.msra.mxu0 0.0
        %885 = vmatprep.subr.mxu0 0.0
        %886 = vmatpush2.msra.mxu0 0.0
        %887 = vmatprep.subr.mxu0 0.0
        %888 = vmatpush2.msra.mxu0 0.0
        %889 = vmatprep.subr.mxu0 0.0
        %890 = vmatpush2.msra.mxu0 0.0
        %891 = vmatprep.subr.mxu0 0.0
        %892 = vmatpush2.msra.mxu0 0.0
        %893 = vmatprep.subr.mxu0 0.0
        %894 = vmatpush2.msra.mxu0 0.0
        %895 = vmatprep.subr.mxu0 0.0
        %896 = vmatpush2.msra.mxu0 0.0
        %897 = vmatprep.subr.mxu0 0.0
        %898 = vmatpush2.msra.mxu0 0.0
        %899 = vmatprep.subr.mxu0 0.0
        %900 = vmatpush2.msra.mxu0 0.0
        %901 = vmatprep.subr.mxu0 0.0
        %902 = vmatpush2.msra.mxu0 0.0
        %903 = vmatprep.subr.mxu0 0.0
        %904 = vmatpush2.msra.mxu0 0.0
        %905 = vmatprep.subr.mxu0 0.0
        %906 = vmatpush2.msra.mxu0 0.0
        %907 = vmatprep.subr.mxu0 0.0
        %908 = vmatpush2.msra.mxu0 0.0
        %909 = vmatprep.mubr.f32.mxu0 0.0
        %910 = vmatmul.mubr.f32.gmra.mxu0 %v837
        %v911 = vpop.f32.mrf.mxu0
        %v912 = vadd.f32 0.0, %v911
        %v913 = vpop.f32.mrf.mxu0
        %v914 = vadd.f32 0.0, %v913
        %915 = vdwg.mxu0
        %v916 = vadd.f32 %v822, %v912
        %v917 = vadd.f32 %v823, %v914
        %v918 = vld [vmem:[#allocation2 + $0x4] sm:$0xff]
        %v919 = vld [vmem:[#allocation2 + $0xc] sm:$0xf]
        %v920 = vsel %vm384, 1, 0
        %v921 = vsel %vm385, 1, 0
        %vm922 = vcmp.eq.s32.totalorder %v920, 1
        %vm923 = vcmp.eq.s32.totalorder %v921, 1
        %v926 = vcombine.high %v918, %v918
        %927 = vrot.lane.b32.xlu0 %v918, 127
        %v928 = vpop.permute.xlu0 %927
        %929 = vrot.lane.b32.xlu0 %v926, 127
        %v930 = vpop.permute.xlu0 %929
        %931 = vrot.lane.b32.xlu0 %v919, 127
        %v932 = vpop.permute.xlu0 %931
        %vm933 = vcmask 1039360
        %v934 = vsel %vm933, %v928, %v930
        %v935 = vsel %vm933, %v930, %v932
        %v938 = vsel %vm922, %v934, 0.0
        %v939 = vsel %vm923, %v935, 0.0
        %s940 = scalar_lea.vmem %s311, 20
        %v941 = vld [vmem:[%s940] sm:$0xf]
        %v943 = vsel %vm450, %v941, 0
        %v946 = vsel %vm454, %v938, 0
        %v949 = vsel %vm454, %v939, 0
        %951 = vmatprep.subr.mxu0 0.0
        %952 = vmatpush1.msra.mxu0 0.0
        %953 = vmatprep.subr.mxu0 0.0
        %954 = vmatpush1.msra.mxu0 0.0
        %955 = vmatprep.subr.mxu0 0.0
        %956 = vmatpush1.msra.mxu0 0.0
        %957 = vmatprep.subr.mxu0 0.0
        %958 = vmatpush1.msra.mxu0 0.0
        %959 = vmatprep.subr.mxu0 0.0
        %960 = vmatpush1.msra.mxu0 0.0
        %961 = vmatprep.subr.mxu0 0.0
        %962 = vmatpush1.msra.mxu0 0.0
        %963 = vmatprep.subr.mxu0 0.0
        %964 = vmatpush1.msra.mxu0 0.0
        %965 = vmatprep.subr.mxu0 0.0
        %966 = vmatpush1.msra.mxu0 0.0
        %967 = vmatprep.subr.mxu0 0.0
        %968 = vmatpush1.msra.mxu0 0.0
        %969 = vmatprep.subr.mxu0 0.0
        %970 = vmatpush1.msra.mxu0 0.0
        %971 = vmatprep.subr.mxu0 0.0
        %972 = vmatpush1.msra.mxu0 0.0
        %973 = vmatprep.subr.mxu0 0.0
        %974 = vmatpush1.msra.mxu0 0.0
        %975 = vmatprep.subr.mxu0 0.0
        %976 = vmatpush1.msra.mxu0 0.0
        %977 = vmatprep.subr.mxu0 0.0
        %978 = vmatpush1.msra.mxu0 0.0
        %979 = vmatprep.subr.mxu0 0.0
        %980 = vmatpush1.msra.mxu0 0.0
        %981 = vmatprep.subr.mxu0 %v949
        %982 = vmatpush1.msra.mxu0 %v946
        %983 = vmatprep.subr.mxu0 0.0
        %984 = vmatpush2.msra.mxu0 0.0
        %985 = vmatprep.subr.mxu0 0.0
        %986 = vmatpush2.msra.mxu0 0.0
        %987 = vmatprep.subr.mxu0 0.0
        %988 = vmatpush2.msra.mxu0 0.0
        %989 = vmatprep.subr.mxu0 0.0
        %990 = vmatpush2.msra.mxu0 0.0
        %991 = vmatprep.subr.mxu0 0.0
        %992 = vmatpush2.msra.mxu0 0.0
        %993 = vmatprep.subr.mxu0 0.0
        %994 = vmatpush2.msra.mxu0 0.0
        %995 = vmatprep.subr.mxu0 0.0
        %996 = vmatpush2.msra.mxu0 0.0
        %997 = vmatprep.subr.mxu0 0.0
        %998 = vmatpush2.msra.mxu0 0.0
        %999 = vmatprep.subr.mxu0 0.0
        %1000 = vmatpush2.msra.mxu0 0.0
        %1001 = vmatprep.subr.mxu0 0.0
        %1002 = vmatpush2.msra.mxu0 0.0
        %1003 = vmatprep.subr.mxu0 0.0
        %1004 = vmatpush2.msra.mxu0 0.0
        %1005 = vmatprep.subr.mxu0 0.0
        %1006 = vmatpush2.msra.mxu0 0.0
        %1007 = vmatprep.subr.mxu0 0.0
        %1008 = vmatpush2.msra.mxu0 0.0
        %1009 = vmatprep.subr.mxu0 0.0
        %1010 = vmatpush2.msra.mxu0 0.0
        %1011 = vmatprep.subr.mxu0 0.0
        %1012 = vmatpush2.msra.mxu0 0.0
        %1013 = vmatprep.subr.mxu0 0.0
        %1014 = vmatpush2.msra.mxu0 0.0
        %1015 = vmatprep.mubr.f32.mxu0 0.0
        %1016 = vmatmul.mubr.f32.gmra.mxu0 %v943
        %v1017 = vpop.f32.mrf.mxu0
        %v1018 = vadd.f32 0.0, %v1017
        %v1019 = vpop.f32.mrf.mxu0
        %v1020 = vadd.f32 0.0, %v1019
        %1021 = vdwg.mxu0
        %v1022 = vadd.f32 %v916, %v1018
        %v1023 = vadd.f32 %v917, %v1020
        %v1024 = vld [vmem:[#allocation2 + $0x4] sm:$0xff]
        %v1025 = vld [vmem:[#allocation2 + $0xc] sm:$0xf]
        %v1026 = vsel %vm396, 1, 0
        %v1027 = vsel %vm397, 1, 0
        %vm1028 = vcmp.eq.s32.totalorder %v1026, 1
        %vm1029 = vcmp.eq.s32.totalorder %v1027, 1
        %v1032 = vcombine.high %v1024, %v1024
        %1033 = vrot.lane.b32.xlu0 %v1024, 113
        %v1034 = vpop.permute.xlu0 %1033
        %1035 = vrot.lane.b32.xlu0 %v1032, 113
        %v1036 = vpop.permute.xlu0 %1035
        %1037 = vrot.lane.b32.xlu0 %v1025, 113
        %v1038 = vpop.permute.xlu0 %1037
        %vm1039 = vcmask 924672
        %v1040 = vsel %vm1039, %v1034, %v1036
        %v1041 = vsel %vm1039, %v1036, %v1038
        %v1044 = vsel %vm1028, %v1040, 0.0
        %v1045 = vsel %vm1029, %v1041, 0.0
        %s1046 = scalar_lea.vmem %s311, 24
        %v1047 = vld [vmem:[%s1046] sm:$0xf]
        %v1049 = vsel %vm450, %v1047, 0
        %v1052 = vsel %vm454, %v1044, 0
        %v1055 = vsel %vm454, %v1045, 0
        %1057 = vmatprep.subr.mxu0 0.0
        %1058 = vmatpush1.msra.mxu0 0.0
        %1059 = vmatprep.subr.mxu0 0.0
        %1060 = vmatpush1.msra.mxu0 0.0
        %1061 = vmatprep.subr.mxu0 0.0
        %1062 = vmatpush1.msra.mxu0 0.0
        %1063 = vmatprep.subr.mxu0 0.0
        %1064 = vmatpush1.msra.mxu0 0.0
        %1065 = vmatprep.subr.mxu0 0.0
        %1066 = vmatpush1.msra.mxu0 0.0
        %1067 = vmatprep.subr.mxu0 0.0
        %1068 = vmatpush1.msra.mxu0 0.0
        %1069 = vmatprep.subr.mxu0 0.0
        %1070 = vmatpush1.msra.mxu0 0.0
        %1071 = vmatprep.subr.mxu0 0.0
        %1072 = vmatpush1.msra.mxu0 0.0
        %1073 = vmatprep.subr.mxu0 0.0
        %1074 = vmatpush1.msra.mxu0 0.0
        %1075 = vmatprep.subr.mxu0 0.0
        %1076 = vmatpush1.msra.mxu0 0.0
        %1077 = vmatprep.subr.mxu0 0.0
        %1078 = vmatpush1.msra.mxu0 0.0
        %1079 = vmatprep.subr.mxu0 0.0
        %1080 = vmatpush1.msra.mxu0 0.0
        %1081 = vmatprep.subr.mxu0 0.0
        %1082 = vmatpush1.msra.mxu0 0.0
        %1083 = vmatprep.subr.mxu0 0.0
        %1084 = vmatpush1.msra.mxu0 0.0
        %1085 = vmatprep.subr.mxu0 0.0
        %1086 = vmatpush1.msra.mxu0 0.0
        %1087 = vmatprep.subr.mxu0 %v1055
        %1088 = vmatpush1.msra.mxu0 %v1052
        %1089 = vmatprep.subr.mxu0 0.0
        %1090 = vmatpush2.msra.mxu0 0.0
        %1091 = vmatprep.subr.mxu0 0.0
        %1092 = vmatpush2.msra.mxu0 0.0
        %1093 = vmatprep.subr.mxu0 0.0
        %1094 = vmatpush2.msra.mxu0 0.0
        %1095 = vmatprep.subr.mxu0 0.0
        %1096 = vmatpush2.msra.mxu0 0.0
        %1097 = vmatprep.subr.mxu0 0.0
        %1098 = vmatpush2.msra.mxu0 0.0
        %1099 = vmatprep.subr.mxu0 0.0
        %1100 = vmatpush2.msra.mxu0 0.0
        %1101 = vmatprep.subr.mxu0 0.0
        %1102 = vmatpush2.msra.mxu0 0.0
        %1103 = vmatprep.subr.mxu0 0.0
        %1104 = vmatpush2.msra.mxu0 0.0
        %1105 = vmatprep.subr.mxu0 0.0
        %1106 = vmatpush2.msra.mxu0 0.0
        %1107 = vmatprep.subr.mxu0 0.0
        %1108 = vmatpush2.msra.mxu0 0.0
        %1109 = vmatprep.subr.mxu0 0.0
        %1110 = vmatpush2.msra.mxu0 0.0
        %1111 = vmatprep.subr.mxu0 0.0
        %1112 = vmatpush2.msra.mxu0 0.0
        %1113 = vmatprep.subr.mxu0 0.0
        %1114 = vmatpush2.msra.mxu0 0.0
        %1115 = vmatprep.subr.mxu0 0.0
        %1116 = vmatpush2.msra.mxu0 0.0
        %1117 = vmatprep.subr.mxu0 0.0
        %1118 = vmatpush2.msra.mxu0 0.0
        %1119 = vmatprep.subr.mxu0 0.0
        %1120 = vmatpush2.msra.mxu0 0.0
        %1121 = vmatprep.mubr.f32.mxu0 0.0
        %1122 = vmatmul.mubr.f32.gmra.mxu0 %v1049
        %v1123 = vpop.f32.mrf.mxu0
        %v1124 = vadd.f32 0.0, %v1123
        %v1125 = vpop.f32.mrf.mxu0
        %v1126 = vadd.f32 0.0, %v1125
        %1127 = vdwg.mxu0
        %v1128 = vadd.f32 %v1022, %v1124
        %v1129 = vadd.f32 %v1023, %v1126
        %v1130 = vld [vmem:[#allocation2 + $0x4] sm:$0xff]
        %v1131 = vld [vmem:[#allocation2 + $0xc] sm:$0xf]
        %v1132 = vsel %vm400, 1, 0
        %v1133 = vsel %vm401, 1, 0
        %vm1134 = vcmp.eq.s32.totalorder %v1132, 1
        %vm1135 = vcmp.eq.s32.totalorder %v1133, 1
        %v1138 = vcombine.high %v1130, %v1130
        %1139 = vrot.lane.b32.xlu0 %v1130, 112
        %v1140 = vpop.permute.xlu0 %1139
        %1141 = vrot.lane.b32.xlu0 %v1138, 112
        %v1142 = vpop.permute.xlu0 %1141
        %1143 = vrot.lane.b32.xlu0 %v1131, 112
        %v1144 = vpop.permute.xlu0 %1143
        %vm1145 = vcmask 916480
        %v1146 = vsel %vm1145, %v1140, %v1142
        %v1147 = vsel %vm1145, %v1142, %v1144
        %v1150 = vsel %vm1134, %v1146, 0.0
        %v1151 = vsel %vm1135, %v1147, 0.0
        %s1152 = scalar_lea.vmem %s311, 28
        %v1153 = vld [vmem:[%s1152] sm:$0xf]
        %v1155 = vsel %vm450, %v1153, 0
        %v1158 = vsel %vm454, %v1150, 0
        %v1161 = vsel %vm454, %v1151, 0
        %1163 = vmatprep.subr.mxu0 0.0
        %1164 = vmatpush1.msra.mxu0 0.0
        %1165 = vmatprep.subr.mxu0 0.0
        %1166 = vmatpush1.msra.mxu0 0.0
        %1167 = vmatprep.subr.mxu0 0.0
        %1168 = vmatpush1.msra.mxu0 0.0
        %1169 = vmatprep.subr.mxu0 0.0
        %1170 = vmatpush1.msra.mxu0 0.0
        %1171 = vmatprep.subr.mxu0 0.0
        %1172 = vmatpush1.msra.mxu0 0.0
        %1173 = vmatprep.subr.mxu0 0.0
        %1174 = vmatpush1.msra.mxu0 0.0
        %1175 = vmatprep.subr.mxu0 0.0
        %1176 = vmatpush1.msra.mxu0 0.0
        %1177 = vmatprep.subr.mxu0 0.0
        %1178 = vmatpush1.msra.mxu0 0.0
        %1179 = vmatprep.subr.mxu0 0.0
        %1180 = vmatpush1.msra.mxu0 0.0
        %1181 = vmatprep.subr.mxu0 0.0
        %1182 = vmatpush1.msra.mxu0 0.0
        %1183 = vmatprep.subr.mxu0 0.0
        %1184 = vmatpush1.msra.mxu0 0.0
        %1185 = vmatprep.subr.mxu0 0.0
        %1186 = vmatpush1.msra.mxu0 0.0
        %1187 = vmatprep.subr.mxu0 0.0
        %1188 = vmatpush1.msra.mxu0 0.0
        %1189 = vmatprep.subr.mxu0 0.0
        %1190 = vmatpush1.msra.mxu0 0.0
        %1191 = vmatprep.subr.mxu0 0.0
        %1192 = vmatpush1.msra.mxu0 0.0
        %1193 = vmatprep.subr.mxu0 %v1161
        %1194 = vmatpush1.msra.mxu0 %v1158
        %1195 = vmatprep.subr.mxu0 0.0
        %1196 = vmatpush2.msra.mxu0 0.0
        %1197 = vmatprep.subr.mxu0 0.0
        %1198 = vmatpush2.msra.mxu0 0.0
        %1199 = vmatprep.subr.mxu0 0.0
        %1200 = vmatpush2.msra.mxu0 0.0
        %1201 = vmatprep.subr.mxu0 0.0
        %1202 = vmatpush2.msra.mxu0 0.0
        %1203 = vmatprep.subr.mxu0 0.0
        %1204 = vmatpush2.msra.mxu0 0.0
        %1205 = vmatprep.subr.mxu0 0.0
        %1206 = vmatpush2.msra.mxu0 0.0
        %1207 = vmatprep.subr.mxu0 0.0
        %1208 = vmatpush2.msra.mxu0 0.0
        %1209 = vmatprep.subr.mxu0 0.0
        %1210 = vmatpush2.msra.mxu0 0.0
        %1211 = vmatprep.subr.mxu0 0.0
        %1212 = vmatpush2.msra.mxu0 0.0
        %1213 = vmatprep.subr.mxu0 0.0
        %1214 = vmatpush2.msra.mxu0 0.0
        %1215 = vmatprep.subr.mxu0 0.0
        %1216 = vmatpush2.msra.mxu0 0.0
        %1217 = vmatprep.subr.mxu0 0.0
        %1218 = vmatpush2.msra.mxu0 0.0
        %1219 = vmatprep.subr.mxu0 0.0
        %1220 = vmatpush2.msra.mxu0 0.0
        %1221 = vmatprep.subr.mxu0 0.0
        %1222 = vmatpush2.msra.mxu0 0.0
        %1223 = vmatprep.subr.mxu0 0.0
        %1224 = vmatpush2.msra.mxu0 0.0
        %1225 = vmatprep.subr.mxu0 0.0
        %1226 = vmatpush2.msra.mxu0 0.0
        %1227 = vmatprep.mubr.f32.mxu0 0.0
        %1228 = vmatmul.mubr.f32.gmra.mxu0 %v1155
        %v1229 = vpop.f32.mrf.mxu0
        %v1230 = vadd.f32 0.0, %v1229
        %v1231 = vpop.f32.mrf.mxu0
        %v1232 = vadd.f32 0.0, %v1231
        %1233 = vdwg.mxu0
        %v1234 = vadd.f32 %v1128, %v1230
        %v1235 = vadd.f32 %v1129, %v1232
        %v1236 = vld [vmem:[#allocation2 + $0x4] sm:$0xff]
        %v1237 = vld [vmem:[#allocation2 + $0xc] sm:$0xf]
        %v1238 = vsel %vm404, 1, 0
        %v1239 = vsel %vm405, 1, 0
        %vm1240 = vcmp.eq.s32.totalorder %v1238, 1
        %vm1241 = vcmp.eq.s32.totalorder %v1239, 1
        %v1244 = vcombine.high %v1236, %v1236
        %1245 = vrot.lane.b32.xlu0 %v1236, 111
        %v1246 = vpop.permute.xlu0 %1245
        %1247 = vrot.lane.b32.xlu0 %v1244, 111
        %v1248 = vpop.permute.xlu0 %1247
        %1249 = vrot.lane.b32.xlu0 %v1237, 111
        %v1250 = vpop.permute.xlu0 %1249
        %vm1251 = vcmask 908288
        %v1252 = vsel %vm1251, %v1246, %v1248
        %v1253 = vsel %vm1251, %v1248, %v1250
        %v1256 = vsel %vm1240, %v1252, 0.0
        %v1257 = vsel %vm1241, %v1253, 0.0
        %s1258 = scalar_lea.vmem %s311, 32
        %v1259 = vld [vmem:[%s1258] sm:$0xf]
        %v1261 = vsel %vm450, %v1259, 0
        %v1264 = vsel %vm454, %v1256, 0
        %v1267 = vsel %vm454, %v1257, 0
        %1269 = vmatprep.subr.mxu0 0.0
        %1270 = vmatpush1.msra.mxu0 0.0
        %1271 = vmatprep.subr.mxu0 0.0
        %1272 = vmatpush1.msra.mxu0 0.0
        %1273 = vmatprep.subr.mxu0 0.0
        %1274 = vmatpush1.msra.mxu0 0.0
        %1275 = vmatprep.subr.mxu0 0.0
        %1276 = vmatpush1.msra.mxu0 0.0
        %1277 = vmatprep.subr.mxu0 0.0
        %1278 = vmatpush1.msra.mxu0 0.0
        %1279 = vmatprep.subr.mxu0 0.0
        %1280 = vmatpush1.msra.mxu0 0.0
        %1281 = vmatprep.subr.mxu0 0.0
        %1282 = vmatpush1.msra.mxu0 0.0
        %1283 = vmatprep.subr.mxu0 0.0
        %1284 = vmatpush1.msra.mxu0 0.0
        %1285 = vmatprep.subr.mxu0 0.0
        %1286 = vmatpush1.msra.mxu0 0.0
        %1287 = vmatprep.subr.mxu0 0.0
        %1288 = vmatpush1.msra.mxu0 0.0
        %1289 = vmatprep.subr.mxu0 0.0
        %1290 = vmatpush1.msra.mxu0 0.0
        %1291 = vmatprep.subr.mxu0 0.0
        %1292 = vmatpush1.msra.mxu0 0.0
        %1293 = vmatprep.subr.mxu0 0.0
        %1294 = vmatpush1.msra.mxu0 0.0
        %1295 = vmatprep.subr.mxu0 0.0
        %1296 = vmatpush1.msra.mxu0 0.0
        %1297 = vmatprep.subr.mxu0 0.0
        %1298 = vmatpush1.msra.mxu0 0.0
        %1299 = vmatprep.subr.mxu0 %v1267
        %1300 = vmatpush1.msra.mxu0 %v1264
        %1301 = vmatprep.subr.mxu0 0.0
        %1302 = vmatpush2.msra.mxu0 0.0
        %1303 = vmatprep.subr.mxu0 0.0
        %1304 = vmatpush2.msra.mxu0 0.0
        %1305 = vmatprep.subr.mxu0 0.0
        %1306 = vmatpush2.msra.mxu0 0.0
        %1307 = vmatprep.subr.mxu0 0.0
        %1308 = vmatpush2.msra.mxu0 0.0
        %1309 = vmatprep.subr.mxu0 0.0
        %1310 = vmatpush2.msra.mxu0 0.0
        %1311 = vmatprep.subr.mxu0 0.0
        %1312 = vmatpush2.msra.mxu0 0.0
        %1313 = vmatprep.subr.mxu0 0.0
        %1314 = vmatpush2.msra.mxu0 0.0
        %1315 = vmatprep.subr.mxu0 0.0
        %1316 = vmatpush2.msra.mxu0 0.0
        %1317 = vmatprep.subr.mxu0 0.0
        %1318 = vmatpush2.msra.mxu0 0.0
        %1319 = vmatprep.subr.mxu0 0.0
        %1320 = vmatpush2.msra.mxu0 0.0
        %1321 = vmatprep.subr.mxu0 0.0
        %1322 = vmatpush2.msra.mxu0 0.0
        %1323 = vmatprep.subr.mxu0 0.0
        %1324 = vmatpush2.msra.mxu0 0.0
        %1325 = vmatprep.subr.mxu0 0.0
        %1326 = vmatpush2.msra.mxu0 0.0
        %1327 = vmatprep.subr.mxu0 0.0
        %1328 = vmatpush2.msra.mxu0 0.0
        %1329 = vmatprep.subr.mxu0 0.0
        %1330 = vmatpush2.msra.mxu0 0.0
        %1331 = vmatprep.subr.mxu0 0.0
        %1332 = vmatpush2.msra.mxu0 0.0
        %1333 = vmatprep.mubr.f32.mxu0 0.0
        %1334 = vmatmul.mubr.f32.gmra.mxu0 %v1261
        %v1335 = vpop.f32.mrf.mxu0
        %v1336 = vadd.f32 0.0, %v1335
        %v1337 = vpop.f32.mrf.mxu0
        %v1338 = vadd.f32 0.0, %v1337
        %1339 = vdwg.mxu0
        %v1340 = vadd.f32 %v1234, %v1336
        %v1341 = vadd.f32 %v1235, %v1338
        %v1342 = vld [vmem:[%s315] sm:$0xf]
        %1344 = vset.pattern.permute.xlu0 0
        %1345 = vperm.xlu0 %1344, %v1342
        %v1346 = vpop.permute.xlu0 %1345
        %v1348 = vadd.f32 %v1340, %v1346
        %v1349 = vadd.f32 %v1341, %v1346
        %vm1350 = vcmp.gt.f32.partialorder %v1348, 0.0
        %vm1351 = vcmp.gt.f32.partialorder %v1349, 0.0
        %v1352 = vmul.f32 %v1348, 0.1
        %v1353 = vmul.f32 %v1349, 0.1
        %v1354 = vsel %vm1350, %v1348, %v1352
        %v1355 = vsel %vm1351, %v1349, %v1353
        %v1358 = vcombine.low %v1354, %v1355
        %1360 = vst [vmem:[#allocation2 + $0x4] sm:$0xff] %v1358
        %v1361 = vld [vmem:[#allocation2] sm:$0xff]
        %v1362 = vld [vmem:[#allocation2 + $0x8] sm:$0xf]
        %v1365 = vcombine.high %v1361, %v1361
        %1366 = vrot.lane.b32.xlu0 %v1361, 17
        %v1367 = vpop.permute.xlu0 %1366
        %1368 = vrot.lane.b32.xlu0 %v1365, 17
        %v1369 = vpop.permute.xlu0 %1368
        %1370 = vrot.lane.b32.xlu0 %v1362, 17
        %v1371 = vpop.permute.xlu0 %1370
        %v1372 = vsel %vm423, %v1367, %v1369
        %v1373 = vsel %vm423, %v1369, %v1371
        %v1376 = vsel %vm412, %v1372, 0.0
        %v1377 = vsel %vm413, %v1373, 0.0
        %v1378 = vld [vmem:[%s320] sm:$0xf]
        %1379 = vrot.lane.b32.xlu0 %v1361, 16
        %v1380 = vpop.permute.xlu0 %1379
        %1381 = vrot.lane.b32.xlu0 %v1365, 16
        %v1382 = vpop.permute.xlu0 %1381
        %1383 = vrot.lane.b32.xlu0 %v1362, 16
        %v1384 = vpop.permute.xlu0 %1383
        %v1385 = vsel %vm441, %v1380, %v1382
        %v1386 = vsel %vm441, %v1382, %v1384
        %v1389 = vsel %vm433, %v1385, 0.0
        %v1390 = vsel %vm434, %v1386, 0.0
        %s1391 = scalar_lea.vmem %s320, 4
        %v1392 = vld [vmem:[%s1391] sm:$0xf]
        %v1394 = vsel %vm450, %v1392, 0
        %v1397 = vsel %vm454, %v1389, 0
        %v1400 = vsel %vm454, %v1390, 0
        %1402 = vmatprep.subr.mxu0 0.0
        %1403 = vmatpush1.msra.mxu0 0.0
        %1404 = vmatprep.subr.mxu0 0.0
        %1405 = vmatpush1.msra.mxu0 0.0
        %1406 = vmatprep.subr.mxu0 0.0
        %1407 = vmatpush1.msra.mxu0 0.0
        %1408 = vmatprep.subr.mxu0 0.0
        %1409 = vmatpush1.msra.mxu0 0.0
        %1410 = vmatprep.subr.mxu0 0.0
        %1411 = vmatpush1.msra.mxu0 0.0
        %1412 = vmatprep.subr.mxu0 0.0
        %1413 = vmatpush1.msra.mxu0 0.0
        %1414 = vmatprep.subr.mxu0 0.0
        %1415 = vmatpush1.msra.mxu0 0.0
        %1416 = vmatprep.subr.mxu0 0.0
        %1417 = vmatpush1.msra.mxu0 0.0
        %1418 = vmatprep.subr.mxu0 0.0
        %1419 = vmatpush1.msra.mxu0 0.0
        %1420 = vmatprep.subr.mxu0 0.0
        %1421 = vmatpush1.msra.mxu0 0.0
        %1422 = vmatprep.subr.mxu0 0.0
        %1423 = vmatpush1.msra.mxu0 0.0
        %1424 = vmatprep.subr.mxu0 0.0
        %1425 = vmatpush1.msra.mxu0 0.0
        %1426 = vmatprep.subr.mxu0 0.0
        %1427 = vmatpush1.msra.mxu0 0.0
        %1428 = vmatprep.subr.mxu0 0.0
        %1429 = vmatpush1.msra.mxu0 0.0
        %1430 = vmatprep.subr.mxu0 0.0
        %1431 = vmatpush1.msra.mxu0 0.0
        %1432 = vmatprep.subr.mxu0 %v1400
        %1433 = vmatpush1.msra.mxu0 %v1397
        %1434 = vmatprep.subr.mxu0 0.0
        %1435 = vmatpush2.msra.mxu0 0.0
        %1436 = vmatprep.subr.mxu0 0.0
        %1437 = vmatpush2.msra.mxu0 0.0
        %1438 = vmatprep.subr.mxu0 0.0
        %1439 = vmatpush2.msra.mxu0 0.0
        %1440 = vmatprep.subr.mxu0 0.0
        %1441 = vmatpush2.msra.mxu0 0.0
        %1442 = vmatprep.subr.mxu0 0.0
        %1443 = vmatpush2.msra.mxu0 0.0
        %1444 = vmatprep.subr.mxu0 0.0
        %1445 = vmatpush2.msra.mxu0 0.0
        %1446 = vmatprep.subr.mxu0 0.0
        %1447 = vmatpush2.msra.mxu0 0.0
        %1448 = vmatprep.subr.mxu0 0.0
        %1449 = vmatpush2.msra.mxu0 0.0
        %1450 = vmatprep.subr.mxu0 0.0
        %1451 = vmatpush2.msra.mxu0 0.0
        %1452 = vmatprep.subr.mxu0 0.0
        %1453 = vmatpush2.msra.mxu0 0.0
        %1454 = vmatprep.subr.mxu0 0.0
        %1455 = vmatpush2.msra.mxu0 0.0
        %1456 = vmatprep.subr.mxu0 0.0
        %1457 = vmatpush2.msra.mxu0 0.0
        %1458 = vmatprep.subr.mxu0 0.0
        %1459 = vmatpush2.msra.mxu0 0.0
        %1460 = vmatprep.subr.mxu0 0.0
        %1461 = vmatpush2.msra.mxu0 0.0
        %1462 = vmatprep.subr.mxu0 0.0
        %1463 = vmatpush2.msra.mxu0 0.0
        %1464 = vmatprep.subr.mxu0 0.0
        %1465 = vmatpush2.msra.mxu0 0.0
        %1466 = vmatprep.mubr.f32.mxu0 0.0
        %1467 = vmatmul.mubr.f32.gmra.mxu0 %v1394
        %v1468 = vpop.f32.mrf.mxu0
        %v1469 = vadd.f32 0.0, %v1468
        %v1470 = vpop.f32.mrf.mxu0
        %v1471 = vadd.f32 0.0, %v1470
        %1472 = vdwg.mxu0
        %v1474 = vsel %vm450, %v1378, 0
        %v1477 = vsel %vm454, %v1376, 0
        %v1480 = vsel %vm454, %v1377, 0
        %1482 = vmatprep.subr.mxu0 0.0
        %1483 = vmatpush1.msra.mxu0 0.0
        %1484 = vmatprep.subr.mxu0 0.0
        %1485 = vmatpush1.msra.mxu0 0.0
        %1486 = vmatprep.subr.mxu0 0.0
        %1487 = vmatpush1.msra.mxu0 0.0
        %1488 = vmatprep.subr.mxu0 0.0
        %1489 = vmatpush1.msra.mxu0 0.0
        %1490 = vmatprep.subr.mxu0 0.0
        %1491 = vmatpush1.msra.mxu0 0.0
        %1492 = vmatprep.subr.mxu0 0.0
        %1493 = vmatpush1.msra.mxu0 0.0
        %1494 = vmatprep.subr.mxu0 0.0
        %1495 = vmatpush1.msra.mxu0 0.0
        %1496 = vmatprep.subr.mxu0 0.0
        %1497 = vmatpush1.msra.mxu0 0.0
        %1498 = vmatprep.subr.mxu0 0.0
        %1499 = vmatpush1.msra.mxu0 0.0
        %1500 = vmatprep.subr.mxu0 0.0
        %1501 = vmatpush1.msra.mxu0 0.0
        %1502 = vmatprep.subr.mxu0 0.0
        %1503 = vmatpush1.msra.mxu0 0.0
        %1504 = vmatprep.subr.mxu0 0.0
        %1505 = vmatpush1.msra.mxu0 0.0
        %1506 = vmatprep.subr.mxu0 0.0
        %1507 = vmatpush1.msra.mxu0 0.0
        %1508 = vmatprep.subr.mxu0 0.0
        %1509 = vmatpush1.msra.mxu0 0.0
        %1510 = vmatprep.subr.mxu0 0.0
        %1511 = vmatpush1.msra.mxu0 0.0
        %1512 = vmatprep.subr.mxu0 %v1480
        %1513 = vmatpush1.msra.mxu0 %v1477
        %1514 = vmatprep.subr.mxu0 0.0
        %1515 = vmatpush2.msra.mxu0 0.0
        %1516 = vmatprep.subr.mxu0 0.0
        %1517 = vmatpush2.msra.mxu0 0.0
        %1518 = vmatprep.subr.mxu0 0.0
        %1519 = vmatpush2.msra.mxu0 0.0
        %1520 = vmatprep.subr.mxu0 0.0
        %1521 = vmatpush2.msra.mxu0 0.0
        %1522 = vmatprep.subr.mxu0 0.0
        %1523 = vmatpush2.msra.mxu0 0.0
        %1524 = vmatprep.subr.mxu0 0.0
        %1525 = vmatpush2.msra.mxu0 0.0
        %1526 = vmatprep.subr.mxu0 0.0
        %1527 = vmatpush2.msra.mxu0 0.0
        %1528 = vmatprep.subr.mxu0 0.0
        %1529 = vmatpush2.msra.mxu0 0.0
        %1530 = vmatprep.subr.mxu0 0.0
        %1531 = vmatpush2.msra.mxu0 0.0
        %1532 = vmatprep.subr.mxu0 0.0
        %1533 = vmatpush2.msra.mxu0 0.0
        %1534 = vmatprep.subr.mxu0 0.0
        %1535 = vmatpush2.msra.mxu0 0.0
        %1536 = vmatprep.subr.mxu0 0.0
        %1537 = vmatpush2.msra.mxu0 0.0
        %1538 = vmatprep.subr.mxu0 0.0
        %1539 = vmatpush2.msra.mxu0 0.0
        %1540 = vmatprep.subr.mxu0 0.0
        %1541 = vmatpush2.msra.mxu0 0.0
        %1542 = vmatprep.subr.mxu0 0.0
        %1543 = vmatpush2.msra.mxu0 0.0
        %1544 = vmatprep.subr.mxu0 0.0
        %1545 = vmatpush2.msra.mxu0 0.0
        %1546 = vmatprep.mubr.f32.mxu0 0.0
        %1547 = vmatmul.mubr.f32.gmra.mxu0 %v1474
        %v1548 = vpop.f32.mrf.mxu0
        %v1549 = vadd.f32 %v1469, %v1548
        %v1550 = vpop.f32.mrf.mxu0
        %v1551 = vadd.f32 %v1471, %v1550
        %1552 = vdwg.mxu0
        %v1553 = vld [vmem:[#allocation2] sm:$0xff]
        %v1554 = vld [vmem:[#allocation2 + $0x8] sm:$0xf]
        %v1557 = vcombine.high %v1553, %v1553
        %1558 = vrot.lane.b32.xlu0 %v1553, 15
        %v1559 = vpop.permute.xlu0 %1558
        %1560 = vrot.lane.b32.xlu0 %v1557, 15
        %v1561 = vpop.permute.xlu0 %1560
        %1562 = vrot.lane.b32.xlu0 %v1554, 15
        %v1563 = vpop.permute.xlu0 %1562
        %v1564 = vsel %vm627, %v1559, %v1561
        %v1565 = vsel %vm627, %v1561, %v1563
        %v1568 = vsel %vm616, %v1564, 0.0
        %v1569 = vsel %vm617, %v1565, 0.0
        %s1570 = scalar_lea.vmem %s320, 8
        %v1571 = vld [vmem:[%s1570] sm:$0xf]
        %v1573 = vsel %vm450, %v1571, 0
        %v1576 = vsel %vm454, %v1568, 0
        %v1579 = vsel %vm454, %v1569, 0
        %1581 = vmatprep.subr.mxu0 0.0
        %1582 = vmatpush1.msra.mxu0 0.0
        %1583 = vmatprep.subr.mxu0 0.0
        %1584 = vmatpush1.msra.mxu0 0.0
        %1585 = vmatprep.subr.mxu0 0.0
        %1586 = vmatpush1.msra.mxu0 0.0
        %1587 = vmatprep.subr.mxu0 0.0
        %1588 = vmatpush1.msra.mxu0 0.0
        %1589 = vmatprep.subr.mxu0 0.0
        %1590 = vmatpush1.msra.mxu0 0.0
        %1591 = vmatprep.subr.mxu0 0.0
        %1592 = vmatpush1.msra.mxu0 0.0
        %1593 = vmatprep.subr.mxu0 0.0
        %1594 = vmatpush1.msra.mxu0 0.0
        %1595 = vmatprep.subr.mxu0 0.0
        %1596 = vmatpush1.msra.mxu0 0.0
        %1597 = vmatprep.subr.mxu0 0.0
        %1598 = vmatpush1.msra.mxu0 0.0
        %1599 = vmatprep.subr.mxu0 0.0
        %1600 = vmatpush1.msra.mxu0 0.0
        %1601 = vmatprep.subr.mxu0 0.0
        %1602 = vmatpush1.msra.mxu0 0.0
        %1603 = vmatprep.subr.mxu0 0.0
        %1604 = vmatpush1.msra.mxu0 0.0
        %1605 = vmatprep.subr.mxu0 0.0
        %1606 = vmatpush1.msra.mxu0 0.0
        %1607 = vmatprep.subr.mxu0 0.0
        %1608 = vmatpush1.msra.mxu0 0.0
        %1609 = vmatprep.subr.mxu0 0.0
        %1610 = vmatpush1.msra.mxu0 0.0
        %1611 = vmatprep.subr.mxu0 %v1579
        %1612 = vmatpush1.msra.mxu0 %v1576
        %1613 = vmatprep.subr.mxu0 0.0
        %1614 = vmatpush2.msra.mxu0 0.0
        %1615 = vmatprep.subr.mxu0 0.0
        %1616 = vmatpush2.msra.mxu0 0.0
        %1617 = vmatprep.subr.mxu0 0.0
        %1618 = vmatpush2.msra.mxu0 0.0
        %1619 = vmatprep.subr.mxu0 0.0
        %1620 = vmatpush2.msra.mxu0 0.0
        %1621 = vmatprep.subr.mxu0 0.0
        %1622 = vmatpush2.msra.mxu0 0.0
        %1623 = vmatprep.subr.mxu0 0.0
        %1624 = vmatpush2.msra.mxu0 0.0
        %1625 = vmatprep.subr.mxu0 0.0
        %1626 = vmatpush2.msra.mxu0 0.0
        %1627 = vmatprep.subr.mxu0 0.0
        %1628 = vmatpush2.msra.mxu0 0.0
        %1629 = vmatprep.subr.mxu0 0.0
        %1630 = vmatpush2.msra.mxu0 0.0
        %1631 = vmatprep.subr.mxu0 0.0
        %1632 = vmatpush2.msra.mxu0 0.0
        %1633 = vmatprep.subr.mxu0 0.0
        %1634 = vmatpush2.msra.mxu0 0.0
        %1635 = vmatprep.subr.mxu0 0.0
        %1636 = vmatpush2.msra.mxu0 0.0
        %1637 = vmatprep.subr.mxu0 0.0
        %1638 = vmatpush2.msra.mxu0 0.0
        %1639 = vmatprep.subr.mxu0 0.0
        %1640 = vmatpush2.msra.mxu0 0.0
        %1641 = vmatprep.subr.mxu0 0.0
        %1642 = vmatpush2.msra.mxu0 0.0
        %1643 = vmatprep.subr.mxu0 0.0
        %1644 = vmatpush2.msra.mxu0 0.0
        %1645 = vmatprep.mubr.f32.mxu0 0.0
        %1646 = vmatmul.mubr.f32.gmra.mxu0 %v1573
        %v1647 = vpop.f32.mrf.mxu0
        %v1648 = vadd.f32 0.0, %v1647
        %v1649 = vpop.f32.mrf.mxu0
        %v1650 = vadd.f32 0.0, %v1649
        %1651 = vdwg.mxu0
        %v1652 = vadd.f32 %v1549, %v1648
        %v1653 = vadd.f32 %v1551, %v1650
        %v1654 = vld [vmem:[#allocation2] sm:$0xff]
        %v1655 = vld [vmem:[#allocation2 + $0x8] sm:$0xf]
        %v1658 = vcombine.high %v1654, %v1654
        %1659 = vrot.lane.b32.xlu0 %v1654, 1
        %v1660 = vpop.permute.xlu0 %1659
        %1661 = vrot.lane.b32.xlu0 %v1658, 1
        %v1662 = vpop.permute.xlu0 %1661
        %1663 = vrot.lane.b32.xlu0 %v1655, 1
        %v1664 = vpop.permute.xlu0 %1663
        %v1665 = vsel %vm733, %v1660, %v1662
        %v1666 = vsel %vm733, %v1662, %v1664
        %v1669 = vsel %vm722, %v1665, 0.0
        %v1670 = vsel %vm723, %v1666, 0.0
        %s1671 = scalar_lea.vmem %s320, 12
        %v1672 = vld [vmem:[%s1671] sm:$0xf]
        %v1674 = vsel %vm450, %v1672, 0
        %v1677 = vsel %vm454, %v1669, 0
        %v1680 = vsel %vm454, %v1670, 0
        %1682 = vmatprep.subr.mxu0 0.0
        %1683 = vmatpush1.msra.mxu0 0.0
        %1684 = vmatprep.subr.mxu0 0.0
        %1685 = vmatpush1.msra.mxu0 0.0
        %1686 = vmatprep.subr.mxu0 0.0
        %1687 = vmatpush1.msra.mxu0 0.0
        %1688 = vmatprep.subr.mxu0 0.0
        %1689 = vmatpush1.msra.mxu0 0.0
        %1690 = vmatprep.subr.mxu0 0.0
        %1691 = vmatpush1.msra.mxu0 0.0
        %1692 = vmatprep.subr.mxu0 0.0
        %1693 = vmatpush1.msra.mxu0 0.0
        %1694 = vmatprep.subr.mxu0 0.0
        %1695 = vmatpush1.msra.mxu0 0.0
        %1696 = vmatprep.subr.mxu0 0.0
        %1697 = vmatpush1.msra.mxu0 0.0
        %1698 = vmatprep.subr.mxu0 0.0
        %1699 = vmatpush1.msra.mxu0 0.0
        %1700 = vmatprep.subr.mxu0 0.0
        %1701 = vmatpush1.msra.mxu0 0.0
        %1702 = vmatprep.subr.mxu0 0.0
        %1703 = vmatpush1.msra.mxu0 0.0
        %1704 = vmatprep.subr.mxu0 0.0
        %1705 = vmatpush1.msra.mxu0 0.0
        %1706 = vmatprep.subr.mxu0 0.0
        %1707 = vmatpush1.msra.mxu0 0.0
        %1708 = vmatprep.subr.mxu0 0.0
        %1709 = vmatpush1.msra.mxu0 0.0
        %1710 = vmatprep.subr.mxu0 0.0
        %1711 = vmatpush1.msra.mxu0 0.0
        %1712 = vmatprep.subr.mxu0 %v1680
        %1713 = vmatpush1.msra.mxu0 %v1677
        %1714 = vmatprep.subr.mxu0 0.0
        %1715 = vmatpush2.msra.mxu0 0.0
        %1716 = vmatprep.subr.mxu0 0.0
        %1717 = vmatpush2.msra.mxu0 0.0
        %1718 = vmatprep.subr.mxu0 0.0
        %1719 = vmatpush2.msra.mxu0 0.0
        %1720 = vmatprep.subr.mxu0 0.0
        %1721 = vmatpush2.msra.mxu0 0.0
        %1722 = vmatprep.subr.mxu0 0.0
        %1723 = vmatpush2.msra.mxu0 0.0
        %1724 = vmatprep.subr.mxu0 0.0
        %1725 = vmatpush2.msra.mxu0 0.0
        %1726 = vmatprep.subr.mxu0 0.0
        %1727 = vmatpush2.msra.mxu0 0.0
        %1728 = vmatprep.subr.mxu0 0.0
        %1729 = vmatpush2.msra.mxu0 0.0
        %1730 = vmatprep.subr.mxu0 0.0
        %1731 = vmatpush2.msra.mxu0 0.0
        %1732 = vmatprep.subr.mxu0 0.0
        %1733 = vmatpush2.msra.mxu0 0.0
        %1734 = vmatprep.subr.mxu0 0.0
        %1735 = vmatpush2.msra.mxu0 0.0
        %1736 = vmatprep.subr.mxu0 0.0
        %1737 = vmatpush2.msra.mxu0 0.0
        %1738 = vmatprep.subr.mxu0 0.0
        %1739 = vmatpush2.msra.mxu0 0.0
        %1740 = vmatprep.subr.mxu0 0.0
        %1741 = vmatpush2.msra.mxu0 0.0
        %1742 = vmatprep.subr.mxu0 0.0
        %1743 = vmatpush2.msra.mxu0 0.0
        %1744 = vmatprep.subr.mxu0 0.0
        %1745 = vmatpush2.msra.mxu0 0.0
        %1746 = vmatprep.mubr.f32.mxu0 0.0
        %1747 = vmatmul.mubr.f32.gmra.mxu0 %v1674
        %v1748 = vpop.f32.mrf.mxu0
        %v1749 = vadd.f32 0.0, %v1748
        %v1750 = vpop.f32.mrf.mxu0
        %v1751 = vadd.f32 0.0, %v1750
        %1752 = vdwg.mxu0
        %v1753 = vadd.f32 %v1652, %v1749
        %v1754 = vadd.f32 %v1653, %v1751
        %v1755 = vld [vmem:[#allocation2 + $0x4] sm:$0xff]
        %v1757 = vcombine.high %v1755, %v1755
        %v1759 = vsel %vm827, %v1755, 0.0
        %v1760 = vsel %vm828, %v1757, 0.0
        %s1761 = scalar_lea.vmem %s320, 16
        %v1762 = vld [vmem:[%s1761] sm:$0xf]
        %v1764 = vsel %vm450, %v1762, 0
        %v1767 = vsel %vm454, %v1759, 0
        %v1770 = vsel %vm454, %v1760, 0
        %1772 = vmatprep.subr.mxu0 0.0
        %1773 = vmatpush1.msra.mxu0 0.0
        %1774 = vmatprep.subr.mxu0 0.0
        %1775 = vmatpush1.msra.mxu0 0.0
        %1776 = vmatprep.subr.mxu0 0.0
        %1777 = vmatpush1.msra.mxu0 0.0
        %1778 = vmatprep.subr.mxu0 0.0
        %1779 = vmatpush1.msra.mxu0 0.0
        %1780 = vmatprep.subr.mxu0 0.0
        %1781 = vmatpush1.msra.mxu0 0.0
        %1782 = vmatprep.subr.mxu0 0.0
        %1783 = vmatpush1.msra.mxu0 0.0
        %1784 = vmatprep.subr.mxu0 0.0
        %1785 = vmatpush1.msra.mxu0 0.0
        %1786 = vmatprep.subr.mxu0 0.0
        %1787 = vmatpush1.msra.mxu0 0.0
        %1788 = vmatprep.subr.mxu0 0.0
        %1789 = vmatpush1.msra.mxu0 0.0
        %1790 = vmatprep.subr.mxu0 0.0
        %1791 = vmatpush1.msra.mxu0 0.0
        %1792 = vmatprep.subr.mxu0 0.0
        %1793 = vmatpush1.msra.mxu0 0.0
        %1794 = vmatprep.subr.mxu0 0.0
        %1795 = vmatpush1.msra.mxu0 0.0
        %1796 = vmatprep.subr.mxu0 0.0
        %1797 = vmatpush1.msra.mxu0 0.0
        %1798 = vmatprep.subr.mxu0 0.0
        %1799 = vmatpush1.msra.mxu0 0.0
        %1800 = vmatprep.subr.mxu0 0.0
        %1801 = vmatpush1.msra.mxu0 0.0
        %1802 = vmatprep.subr.mxu0 %v1770
        %1803 = vmatpush1.msra.mxu0 %v1767
        %1804 = vmatprep.subr.mxu0 0.0
        %1805 = vmatpush2.msra.mxu0 0.0
        %1806 = vmatprep.subr.mxu0 0.0
        %1807 = vmatpush2.msra.mxu0 0.0
        %1808 = vmatprep.subr.mxu0 0.0
        %1809 = vmatpush2.msra.mxu0 0.0
        %1810 = vmatprep.subr.mxu0 0.0
        %1811 = vmatpush2.msra.mxu0 0.0
        %1812 = vmatprep.subr.mxu0 0.0
        %1813 = vmatpush2.msra.mxu0 0.0
        %1814 = vmatprep.subr.mxu0 0.0
        %1815 = vmatpush2.msra.mxu0 0.0
        %1816 = vmatprep.subr.mxu0 0.0
        %1817 = vmatpush2.msra.mxu0 0.0
        %1818 = vmatprep.subr.mxu0 0.0
        %1819 = vmatpush2.msra.mxu0 0.0
        %1820 = vmatprep.subr.mxu0 0.0
        %1821 = vmatpush2.msra.mxu0 0.0
        %1822 = vmatprep.subr.mxu0 0.0
        %1823 = vmatpush2.msra.mxu0 0.0
        %1824 = vmatprep.subr.mxu0 0.0
        %1825 = vmatpush2.msra.mxu0 0.0
        %1826 = vmatprep.subr.mxu0 0.0
        %1827 = vmatpush2.msra.mxu0 0.0
        %1828 = vmatprep.subr.mxu0 0.0
        %1829 = vmatpush2.msra.mxu0 0.0
        %1830 = vmatprep.subr.mxu0 0.0
        %1831 = vmatpush2.msra.mxu0 0.0
        %1832 = vmatprep.subr.mxu0 0.0
        %1833 = vmatpush2.msra.mxu0 0.0
        %1834 = vmatprep.subr.mxu0 0.0
        %1835 = vmatpush2.msra.mxu0 0.0
        %1836 = vmatprep.mubr.f32.mxu0 0.0
        %1837 = vmatmul.mubr.f32.gmra.mxu0 %v1764
        %v1838 = vpop.f32.mrf.mxu0
        %v1839 = vadd.f32 0.0, %v1838
        %v1840 = vpop.f32.mrf.mxu0
        %v1841 = vadd.f32 0.0, %v1840
        %1842 = vdwg.mxu0
        %v1843 = vadd.f32 %v1753, %v1839
        %v1844 = vadd.f32 %v1754, %v1841
        %v1845 = vld [vmem:[#allocation2 + $0x4] sm:$0xff]
        %v1846 = vld [vmem:[#allocation2 + $0xc] sm:$0xf]
        %v1849 = vcombine.high %v1845, %v1845
        %1850 = vrot.lane.b32.xlu0 %v1845, 127
        %v1851 = vpop.permute.xlu0 %1850
        %1852 = vrot.lane.b32.xlu0 %v1849, 127
        %v1853 = vpop.permute.xlu0 %1852
        %1854 = vrot.lane.b32.xlu0 %v1846, 127
        %v1855 = vpop.permute.xlu0 %1854
        %v1856 = vsel %vm933, %v1851, %v1853
        %v1857 = vsel %vm933, %v1853, %v1855
        %v1860 = vsel %vm922, %v1856, 0.0
        %v1861 = vsel %vm923, %v1857, 0.0
        %s1862 = scalar_lea.vmem %s320, 20
        %v1863 = vld [vmem:[%s1862] sm:$0xf]
        %v1865 = vsel %vm450, %v1863, 0
        %v1868 = vsel %vm454, %v1860, 0
        %v1871 = vsel %vm454, %v1861, 0
        %1873 = vmatprep.subr.mxu0 0.0
        %1874 = vmatpush1.msra.mxu0 0.0
        %1875 = vmatprep.subr.mxu0 0.0
        %1876 = vmatpush1.msra.mxu0 0.0
        %1877 = vmatprep.subr.mxu0 0.0
        %1878 = vmatpush1.msra.mxu0 0.0
        %1879 = vmatprep.subr.mxu0 0.0
        %1880 = vmatpush1.msra.mxu0 0.0
        %1881 = vmatprep.subr.mxu0 0.0
        %1882 = vmatpush1.msra.mxu0 0.0
        %1883 = vmatprep.subr.mxu0 0.0
        %1884 = vmatpush1.msra.mxu0 0.0
        %1885 = vmatprep.subr.mxu0 0.0
        %1886 = vmatpush1.msra.mxu0 0.0
        %1887 = vmatprep.subr.mxu0 0.0
        %1888 = vmatpush1.msra.mxu0 0.0
        %1889 = vmatprep.subr.mxu0 0.0
        %1890 = vmatpush1.msra.mxu0 0.0
        %1891 = vmatprep.subr.mxu0 0.0
        %1892 = vmatpush1.msra.mxu0 0.0
        %1893 = vmatprep.subr.mxu0 0.0
        %1894 = vmatpush1.msra.mxu0 0.0
        %1895 = vmatprep.subr.mxu0 0.0
        %1896 = vmatpush1.msra.mxu0 0.0
        %1897 = vmatprep.subr.mxu0 0.0
        %1898 = vmatpush1.msra.mxu0 0.0
        %1899 = vmatprep.subr.mxu0 0.0
        %1900 = vmatpush1.msra.mxu0 0.0
        %1901 = vmatprep.subr.mxu0 0.0
        %1902 = vmatpush1.msra.mxu0 0.0
        %1903 = vmatprep.subr.mxu0 %v1871
        %1904 = vmatpush1.msra.mxu0 %v1868
        %1905 = vmatprep.subr.mxu0 0.0
        %1906 = vmatpush2.msra.mxu0 0.0
        %1907 = vmatprep.subr.mxu0 0.0
        %1908 = vmatpush2.msra.mxu0 0.0
        %1909 = vmatprep.subr.mxu0 0.0
        %1910 = vmatpush2.msra.mxu0 0.0
        %1911 = vmatprep.subr.mxu0 0.0
        %1912 = vmatpush2.msra.mxu0 0.0
        %1913 = vmatprep.subr.mxu0 0.0
        %1914 = vmatpush2.msra.mxu0 0.0
        %1915 = vmatprep.subr.mxu0 0.0
        %1916 = vmatpush2.msra.mxu0 0.0
        %1917 = vmatprep.subr.mxu0 0.0
        %1918 = vmatpush2.msra.mxu0 0.0
        %1919 = vmatprep.subr.mxu0 0.0
        %1920 = vmatpush2.msra.mxu0 0.0
        %1921 = vmatprep.subr.mxu0 0.0
        %1922 = vmatpush2.msra.mxu0 0.0
        %1923 = vmatprep.subr.mxu0 0.0
        %1924 = vmatpush2.msra.mxu0 0.0
        %1925 = vmatprep.subr.mxu0 0.0
        %1926 = vmatpush2.msra.mxu0 0.0
        %1927 = vmatprep.subr.mxu0 0.0
        %1928 = vmatpush2.msra.mxu0 0.0
        %1929 = vmatprep.subr.mxu0 0.0
        %1930 = vmatpush2.msra.mxu0 0.0
        %1931 = vmatprep.subr.mxu0 0.0
        %1932 = vmatpush2.msra.mxu0 0.0
        %1933 = vmatprep.subr.mxu0 0.0
        %1934 = vmatpush2.msra.mxu0 0.0
        %1935 = vmatprep.subr.mxu0 0.0
        %1936 = vmatpush2.msra.mxu0 0.0
        %1937 = vmatprep.mubr.f32.mxu0 0.0
        %1938 = vmatmul.mubr.f32.gmra.mxu0 %v1865
        %v1939 = vpop.f32.mrf.mxu0
        %v1940 = vadd.f32 0.0, %v1939
        %v1941 = vpop.f32.mrf.mxu0
        %v1942 = vadd.f32 0.0, %v1941
        %1943 = vdwg.mxu0
        %v1944 = vadd.f32 %v1843, %v1940
        %v1945 = vadd.f32 %v1844, %v1942
        %v1946 = vld [vmem:[#allocation2 + $0x4] sm:$0xff]
        %v1947 = vld [vmem:[#allocation2 + $0xc] sm:$0xf]
        %v1950 = vcombine.high %v1946, %v1946
        %1951 = vrot.lane.b32.xlu0 %v1946, 113
        %v1952 = vpop.permute.xlu0 %1951
        %1953 = vrot.lane.b32.xlu0 %v1950, 113
        %v1954 = vpop.permute.xlu0 %1953
        %1955 = vrot.lane.b32.xlu0 %v1947, 113
        %v1956 = vpop.permute.xlu0 %1955
        %v1957 = vsel %vm1039, %v1952, %v1954
        %v1958 = vsel %vm1039, %v1954, %v1956
        %v1961 = vsel %vm1028, %v1957, 0.0
        %v1962 = vsel %vm1029, %v1958, 0.0
        %s1963 = scalar_lea.vmem %s320, 24
        %v1964 = vld [vmem:[%s1963] sm:$0xf]
        %v1966 = vsel %vm450, %v1964, 0
        %v1969 = vsel %vm454, %v1961, 0
        %v1972 = vsel %vm454, %v1962, 0
        %1974 = vmatprep.subr.mxu0 0.0
        %1975 = vmatpush1.msra.mxu0 0.0
        %1976 = vmatprep.subr.mxu0 0.0
        %1977 = vmatpush1.msra.mxu0 0.0
        %1978 = vmatprep.subr.mxu0 0.0
        %1979 = vmatpush1.msra.mxu0 0.0
        %1980 = vmatprep.subr.mxu0 0.0
        %1981 = vmatpush1.msra.mxu0 0.0
        %1982 = vmatprep.subr.mxu0 0.0
        %1983 = vmatpush1.msra.mxu0 0.0
        %1984 = vmatprep.subr.mxu0 0.0
        %1985 = vmatpush1.msra.mxu0 0.0
        %1986 = vmatprep.subr.mxu0 0.0
        %1987 = vmatpush1.msra.mxu0 0.0
        %1988 = vmatprep.subr.mxu0 0.0
        %1989 = vmatpush1.msra.mxu0 0.0
        %1990 = vmatprep.subr.mxu0 0.0
        %1991 = vmatpush1.msra.mxu0 0.0
        %1992 = vmatprep.subr.mxu0 0.0
        %1993 = vmatpush1.msra.mxu0 0.0
        %1994 = vmatprep.subr.mxu0 0.0
        %1995 = vmatpush1.msra.mxu0 0.0
        %1996 = vmatprep.subr.mxu0 0.0
        %1997 = vmatpush1.msra.mxu0 0.0
        %1998 = vmatprep.subr.mxu0 0.0
        %1999 = vmatpush1.msra.mxu0 0.0
        %2000 = vmatprep.subr.mxu0 0.0
        %2001 = vmatpush1.msra.mxu0 0.0
        %2002 = vmatprep.subr.mxu0 0.0
        %2003 = vmatpush1.msra.mxu0 0.0
        %2004 = vmatprep.subr.mxu0 %v1972
        %2005 = vmatpush1.msra.mxu0 %v1969
        %2006 = vmatprep.subr.mxu0 0.0
        %2007 = vmatpush2.msra.mxu0 0.0
        %2008 = vmatprep.subr.mxu0 0.0
        %2009 = vmatpush2.msra.mxu0 0.0
        %2010 = vmatprep.subr.mxu0 0.0
        %2011 = vmatpush2.msra.mxu0 0.0
        %2012 = vmatprep.subr.mxu0 0.0
        %2013 = vmatpush2.msra.mxu0 0.0
        %2014 = vmatprep.subr.mxu0 0.0
        %2015 = vmatpush2.msra.mxu0 0.0
        %2016 = vmatprep.subr.mxu0 0.0
        %2017 = vmatpush2.msra.mxu0 0.0
        %2018 = vmatprep.subr.mxu0 0.0
        %2019 = vmatpush2.msra.mxu0 0.0
        %2020 = vmatprep.subr.mxu0 0.0
        %2021 = vmatpush2.msra.mxu0 0.0
        %2022 = vmatprep.subr.mxu0 0.0
        %2023 = vmatpush2.msra.mxu0 0.0
        %2024 = vmatprep.subr.mxu0 0.0
        %2025 = vmatpush2.msra.mxu0 0.0
        %2026 = vmatprep.subr.mxu0 0.0
        %2027 = vmatpush2.msra.mxu0 0.0
        %2028 = vmatprep.subr.mxu0 0.0
        %2029 = vmatpush2.msra.mxu0 0.0
        %2030 = vmatprep.subr.mxu0 0.0
        %2031 = vmatpush2.msra.mxu0 0.0
        %2032 = vmatprep.subr.mxu0 0.0
        %2033 = vmatpush2.msra.mxu0 0.0
        %2034 = vmatprep.subr.mxu0 0.0
        %2035 = vmatpush2.msra.mxu0 0.0
        %2036 = vmatprep.subr.mxu0 0.0
        %2037 = vmatpush2.msra.mxu0 0.0
        %2038 = vmatprep.mubr.f32.mxu0 0.0
        %2039 = vmatmul.mubr.f32.gmra.mxu0 %v1966
        %v2040 = vpop.f32.mrf.mxu0
        %v2041 = vadd.f32 0.0, %v2040
        %v2042 = vpop.f32.mrf.mxu0
        %v2043 = vadd.f32 0.0, %v2042
        %2044 = vdwg.mxu0
        %v2045 = vadd.f32 %v1944, %v2041
        %v2046 = vadd.f32 %v1945, %v2043
        %v2047 = vld [vmem:[#allocation2 + $0x4] sm:$0xff]
        %v2048 = vld [vmem:[#allocation2 + $0xc] sm:$0xf]
        %v2051 = vcombine.high %v2047, %v2047
        %2052 = vrot.lane.b32.xlu0 %v2047, 112
        %v2053 = vpop.permute.xlu0 %2052
        %2054 = vrot.lane.b32.xlu0 %v2051, 112
        %v2055 = vpop.permute.xlu0 %2054
        %2056 = vrot.lane.b32.xlu0 %v2048, 112
        %v2057 = vpop.permute.xlu0 %2056
        %v2058 = vsel %vm1145, %v2053, %v2055
        %v2059 = vsel %vm1145, %v2055, %v2057
        %v2062 = vsel %vm1134, %v2058, 0.0
        %v2063 = vsel %vm1135, %v2059, 0.0
        %s2064 = scalar_lea.vmem %s320, 28
        %v2065 = vld [vmem:[%s2064] sm:$0xf]
        %v2067 = vsel %vm450, %v2065, 0
        %v2070 = vsel %vm454, %v2062, 0
        %v2073 = vsel %vm454, %v2063, 0
        %2075 = vmatprep.subr.mxu0 0.0
        %2076 = vmatpush1.msra.mxu0 0.0
        %2077 = vmatprep.subr.mxu0 0.0
        %2078 = vmatpush1.msra.mxu0 0.0
        %2079 = vmatprep.subr.mxu0 0.0
        %2080 = vmatpush1.msra.mxu0 0.0
        %2081 = vmatprep.subr.mxu0 0.0
        %2082 = vmatpush1.msra.mxu0 0.0
        %2083 = vmatprep.subr.mxu0 0.0
        %2084 = vmatpush1.msra.mxu0 0.0
        %2085 = vmatprep.subr.mxu0 0.0
        %2086 = vmatpush1.msra.mxu0 0.0
        %2087 = vmatprep.subr.mxu0 0.0
        %2088 = vmatpush1.msra.mxu0 0.0
        %2089 = vmatprep.subr.mxu0 0.0
        %2090 = vmatpush1.msra.mxu0 0.0
        %2091 = vmatprep.subr.mxu0 0.0
        %2092 = vmatpush1.msra.mxu0 0.0
        %2093 = vmatprep.subr.mxu0 0.0
        %2094 = vmatpush1.msra.mxu0 0.0
        %2095 = vmatprep.subr.mxu0 0.0
        %2096 = vmatpush1.msra.mxu0 0.0
        %2097 = vmatprep.subr.mxu0 0.0
        %2098 = vmatpush1.msra.mxu0 0.0
        %2099 = vmatprep.subr.mxu0 0.0
        %2100 = vmatpush1.msra.mxu0 0.0
        %2101 = vmatprep.subr.mxu0 0.0
        %2102 = vmatpush1.msra.mxu0 0.0
        %2103 = vmatprep.subr.mxu0 0.0
        %2104 = vmatpush1.msra.mxu0 0.0
        %2105 = vmatprep.subr.mxu0 %v2073
        %2106 = vmatpush1.msra.mxu0 %v2070
        %2107 = vmatprep.subr.mxu0 0.0
        %2108 = vmatpush2.msra.mxu0 0.0
        %2109 = vmatprep.subr.mxu0 0.0
        %2110 = vmatpush2.msra.mxu0 0.0
        %2111 = vmatprep.subr.mxu0 0.0
        %2112 = vmatpush2.msra.mxu0 0.0
        %2113 = vmatprep.subr.mxu0 0.0
        %2114 = vmatpush2.msra.mxu0 0.0
        %2115 = vmatprep.subr.mxu0 0.0
        %2116 = vmatpush2.msra.mxu0 0.0
        %2117 = vmatprep.subr.mxu0 0.0
        %2118 = vmatpush2.msra.mxu0 0.0
        %2119 = vmatprep.subr.mxu0 0.0
        %2120 = vmatpush2.msra.mxu0 0.0
        %2121 = vmatprep.subr.mxu0 0.0
        %2122 = vmatpush2.msra.mxu0 0.0
        %2123 = vmatprep.subr.mxu0 0.0
        %2124 = vmatpush2.msra.mxu0 0.0
        %2125 = vmatprep.subr.mxu0 0.0
        %2126 = vmatpush2.msra.mxu0 0.0
        %2127 = vmatprep.subr.mxu0 0.0
        %2128 = vmatpush2.msra.mxu0 0.0
        %2129 = vmatprep.subr.mxu0 0.0
        %2130 = vmatpush2.msra.mxu0 0.0
        %2131 = vmatprep.subr.mxu0 0.0
        %2132 = vmatpush2.msra.mxu0 0.0
        %2133 = vmatprep.subr.mxu0 0.0
        %2134 = vmatpush2.msra.mxu0 0.0
        %2135 = vmatprep.subr.mxu0 0.0
        %2136 = vmatpush2.msra.mxu0 0.0
        %2137 = vmatprep.subr.mxu0 0.0
        %2138 = vmatpush2.msra.mxu0 0.0
        %2139 = vmatprep.mubr.f32.mxu0 0.0
        %2140 = vmatmul.mubr.f32.gmra.mxu0 %v2067
        %v2141 = vpop.f32.mrf.mxu0
        %v2142 = vadd.f32 0.0, %v2141
        %v2143 = vpop.f32.mrf.mxu0
        %v2144 = vadd.f32 0.0, %v2143
        %2145 = vdwg.mxu0
        %v2146 = vadd.f32 %v2045, %v2142
        %v2147 = vadd.f32 %v2046, %v2144
        %v2148 = vld [vmem:[#allocation2 + $0x4] sm:$0xff]
        %v2149 = vld [vmem:[#allocation2 + $0xc] sm:$0xf]
        %v2152 = vcombine.high %v2148, %v2148
        %2153 = vrot.lane.b32.xlu0 %v2148, 111
        %v2154 = vpop.permute.xlu0 %2153
        %2155 = vrot.lane.b32.xlu0 %v2152, 111
        %v2156 = vpop.permute.xlu0 %2155
        %2157 = vrot.lane.b32.xlu0 %v2149, 111
        %v2158 = vpop.permute.xlu0 %2157
        %v2159 = vsel %vm1251, %v2154, %v2156
        %v2160 = vsel %vm1251, %v2156, %v2158
        %v2163 = vsel %vm1240, %v2159, 0.0
        %v2164 = vsel %vm1241, %v2160, 0.0
        %s2165 = scalar_lea.vmem %s320, 32
        %v2166 = vld [vmem:[%s2165] sm:$0xf]
        %v2168 = vsel %vm450, %v2166, 0
        %v2171 = vsel %vm454, %v2163, 0
        %v2174 = vsel %vm454, %v2164, 0
        %2176 = vmatprep.subr.mxu0 0.0
        %2177 = vmatpush1.msra.mxu0 0.0
        %2178 = vmatprep.subr.mxu0 0.0
        %2179 = vmatpush1.msra.mxu0 0.0
        %2180 = vmatprep.subr.mxu0 0.0
        %2181 = vmatpush1.msra.mxu0 0.0
        %2182 = vmatprep.subr.mxu0 0.0
        %2183 = vmatpush1.msra.mxu0 0.0
        %2184 = vmatprep.subr.mxu0 0.0
        %2185 = vmatpush1.msra.mxu0 0.0
        %2186 = vmatprep.subr.mxu0 0.0
        %2187 = vmatpush1.msra.mxu0 0.0
        %2188 = vmatprep.subr.mxu0 0.0
        %2189 = vmatpush1.msra.mxu0 0.0
        %2190 = vmatprep.subr.mxu0 0.0
        %2191 = vmatpush1.msra.mxu0 0.0
        %2192 = vmatprep.subr.mxu0 0.0
        %2193 = vmatpush1.msra.mxu0 0.0
        %2194 = vmatprep.subr.mxu0 0.0
        %2195 = vmatpush1.msra.mxu0 0.0
        %2196 = vmatprep.subr.mxu0 0.0
        %2197 = vmatpush1.msra.mxu0 0.0
        %2198 = vmatprep.subr.mxu0 0.0
        %2199 = vmatpush1.msra.mxu0 0.0
        %2200 = vmatprep.subr.mxu0 0.0
        %2201 = vmatpush1.msra.mxu0 0.0
        %2202 = vmatprep.subr.mxu0 0.0
        %2203 = vmatpush1.msra.mxu0 0.0
        %2204 = vmatprep.subr.mxu0 0.0
        %2205 = vmatpush1.msra.mxu0 0.0
        %2206 = vmatprep.subr.mxu0 %v2174
        %2207 = vmatpush1.msra.mxu0 %v2171
        %2208 = vmatprep.subr.mxu0 0.0
        %2209 = vmatpush2.msra.mxu0 0.0
        %2210 = vmatprep.subr.mxu0 0.0
        %2211 = vmatpush2.msra.mxu0 0.0
        %2212 = vmatprep.subr.mxu0 0.0
        %2213 = vmatpush2.msra.mxu0 0.0
        %2214 = vmatprep.subr.mxu0 0.0
        %2215 = vmatpush2.msra.mxu0 0.0
        %2216 = vmatprep.subr.mxu0 0.0
        %2217 = vmatpush2.msra.mxu0 0.0
        %2218 = vmatprep.subr.mxu0 0.0
        %2219 = vmatpush2.msra.mxu0 0.0
        %2220 = vmatprep.subr.mxu0 0.0
        %2221 = vmatpush2.msra.mxu0 0.0
        %2222 = vmatprep.subr.mxu0 0.0
        %2223 = vmatpush2.msra.mxu0 0.0
        %2224 = vmatprep.subr.mxu0 0.0
        %2225 = vmatpush2.msra.mxu0 0.0
        %2226 = vmatprep.subr.mxu0 0.0
        %2227 = vmatpush2.msra.mxu0 0.0
        %2228 = vmatprep.subr.mxu0 0.0
        %2229 = vmatpush2.msra.mxu0 0.0
        %2230 = vmatprep.subr.mxu0 0.0
        %2231 = vmatpush2.msra.mxu0 0.0
        %2232 = vmatprep.subr.mxu0 0.0
        %2233 = vmatpush2.msra.mxu0 0.0
        %2234 = vmatprep.subr.mxu0 0.0
        %2235 = vmatpush2.msra.mxu0 0.0
        %2236 = vmatprep.subr.mxu0 0.0
        %2237 = vmatpush2.msra.mxu0 0.0
        %2238 = vmatprep.subr.mxu0 0.0
        %2239 = vmatpush2.msra.mxu0 0.0
        %2240 = vmatprep.mubr.f32.mxu0 0.0
        %2241 = vmatmul.mubr.f32.gmra.mxu0 %v2168
        %v2242 = vpop.f32.mrf.mxu0
        %v2243 = vadd.f32 0.0, %v2242
        %v2244 = vpop.f32.mrf.mxu0
        %v2245 = vadd.f32 0.0, %v2244
        %2246 = vdwg.mxu0
        %v2247 = vadd.f32 %v2146, %v2243
        %v2248 = vadd.f32 %v2147, %v2245
        %v2249 = vld [vmem:[%s324] sm:$0xf]
        %2251 = vset.pattern.permute.xlu0 0
        %2252 = vperm.xlu0 %2251, %v2249
        %v2253 = vpop.permute.xlu0 %2252
        %v2255 = vadd.f32 %v2247, %v2253
        %v2256 = vadd.f32 %v2248, %v2253
        %v2257 = vsub.f32 0.0, %v2255
        %v2258 = vsub.f32 0.0, %v2256
        %v2259 = vmul.f32 %v2257, 1.442695
        %v2260 = vpow.pop %v2259
        %v2261 = vmul.f32 %v2258, 1.442695
        %v2262 = vpow.pop %v2261
        %v2263 = vadd.f32 %v2260, 1.0
        %v2264 = vadd.f32 %v2262, 1.0
        %v2265 = vrcp.pop %v2263
        %v2266 = vmul.f32 1.0, %v2265
        %v2267 = vrcp.pop %v2264
        %v2268 = vmul.f32 1.0, %v2267
        %v2271 = vcombine.low %v2266, %v2268
        %v2273 = vmul.f32 %v406, %v2271
        %2274 = vst [vmem:[%s297] sm:$0xff] %v2273
        %s2275 = sand.u32 %s173, 1
        %s2276 = scalar_lea.sflag [#allocation4], %s2275
        %s2277 = sand.u32 %s173, 1
        %s2278 = smul.addr %s2277, 8
        %s2279 = scalar_lea.vmem [#allocation3], %s2278
        // Predicated region
        $region41: #{tpu_custom_call.1} parent=39 // pred_check
          %p2280 = pneg %p183
        $region42: #{tpu_custom_call.1} parent=39 // pred_check_branch
          %2282 = sbr.rel (%p2280) target = $region44
        $region43: #{tpu_custom_call.1} parent=39 // pred_region
          %s2284 = ssub.s32 128, 128
          %2285 = vsyncadd %s2276, %s2284
          %s2286 = smul.addr %s23, 2
          %s2287 = smul.addr %s24, 4
          %s2288 = sadd.s32 %s2286, %s2287
          %s2289 = smul.addr %s2288, 64
          %s2290 = scalar_lea.hbm %s5, %s2289
          %s2292 = sshll.u32 %s2279, 4
          %s2293 = int_to_ptr.vmem [resolvable:$true] %s2292
          %2295 = dma.vmem_to_hbm [thread:$0]  %s2293, 128, %s2290, %s2276
        $region44: #{tpu_custom_call.1} parent=39 // pred_fallthru
          _
      $region40: #{tpu_custom_call.1} parent=5 // pred_fallthru
        _
      %p2296 = scmp.le.s32.totalorder 2, %s14
      // Predicated region
      $region45: #{tpu_custom_call.1} parent=5 // pred_check
        %p2297 = pneg %p2296
      $region46: #{tpu_custom_call.1} parent=5 // pred_check_branch
        %2299 = sbr.rel (%p2297) target = $region48
      $region47: #{tpu_custom_call.1} parent=5 // pred_region
        %s2300 = ssub.s32 %s14, 2
        // Predicated region
        $region49: #{tpu_custom_call.1} parent=47 // pred_check
          %p2301 = pneg %p189
        $region50: #{tpu_custom_call.1} parent=47 // pred_check_branch
          %2303 = sbr.rel (%p2301) target = $region52
        $region51: #{tpu_custom_call.1} parent=47 // pred_region
          %s2304 = sand.u32 %s174, 1
          %s2305 = scalar_lea.sflag [#allocation4], %s2304
          %s2306 = sand.u32 %s174, 1
          %s2307 = smul.addr %s2306, 8
          %s2308 = scalar_lea.vmem [#allocation3], %s2307
          %2309 = dma.done %s2305, 128
        $region52: #{tpu_custom_call.1} parent=47 // pred_fallthru
          _
      $region48: #{tpu_custom_call.1} parent=5 // pred_fallthru
        _
    $region6: #{tpu_custom_call.1} parent=1 // loop_footer
      %s18 = sadd.s32 1, %s14
    $region7: #{tpu_custom_call.1} parent=1 // loop_footer_branch
      %13 = sbr.rel target = $region3
    $region8: #{tpu_custom_call.1} parent=1 // loop_exit
      _
    %2310 = vsyncpa [#allocation4], 1
    %s2311 = scalar_lea.sflag [#allocation4], 1
    %2312 = vsyncpa %s2311, 1

</llo_original>
